<compile_context>
chip_gen: v7x
topology: tpu7x:2x2x1
jax: 0.10.0
libtpu: 0.0.40
codegen_flags: <defaults>
</compile_context>

<pallas_src>
import functools

import jax
import jax.numpy as jnp
from jax import lax
from jax.experimental import pallas as pl
from jax.experimental.pallas import tpu as pltpu

_LN_EPS = 1e-5  # PyTorch nn.LayerNorm default eps


def _round_up(x, m):
    return ((x + m - 1) // m) * m


# --------------------------------------------------------------------------------------
# Generation-aware hardware queries (defensive: fall back to conservative defaults).
# --------------------------------------------------------------------------------------
def _device_kind():
    try:
        return jax.devices()[0].device_kind.lower()
    except Exception:
        return ""


def _feature_pad():
    # v6e / v7x MXUs are 2x256x256 -> pad feature dims to 256; v5e and older are 128x128.
    kind = _device_kind()
    if any(v in kind for v in ("v2", "v3", "v4", "v5")):
        return 128
    return 256


def _vmem_capacity_bytes():
    try:
        return int(pltpu.get_tpu_info().vmem_capacity_bytes)
    except Exception:
        pass
    kind = _device_kind()
    if "v5" in kind or "v6" in kind:
        return 128 << 20
    return 64 << 20  # v7x / unknown: be conservative


# --------------------------------------------------------------------------------------
# In-kernel math helpers.
# --------------------------------------------------------------------------------------
def _layernorm(x, w, b, n_valid):
    """LayerNorm over the last axis. Columns >= n_valid are zero padding (and w/b are
    zero there), so plain sums give the statistics of the valid columns and the padded
    outputs stay exactly zero — no iota/mask needed."""
    inv_n = jnp.float32(1.0 / n_valid)
    mu = jnp.sum(x, axis=-1, keepdims=True) * inv_n
    var = jnp.maximum(jnp.sum(x * x, axis=-1, keepdims=True) * inv_n - mu * mu, 0.0)
    return (x - mu) * lax.rsqrt(var + _LN_EPS) * w + b


def _gelu_exact(x):
    # PyTorch nn.GELU() default: 0.5 * x * (1 + erf(x / sqrt(2)))
    return 0.5 * x * (1.0 + lax.erf(x * jnp.float32(0.7071067811865476)))


# --------------------------------------------------------------------------------------
# Kernel body.
# --------------------------------------------------------------------------------------
def activator_block_kernel(
    x_ref,                  # (TM, Dp) f32
    ln0_w_ref, ln0_b_ref,   # (1, Dp) f32          -- ActivatorBlock.norm
    w12_ref, b12_ref,       # (Dp, 2*Hp) bf16, (1, 2*Hp) f32  -- fused proj_1 | proj_2
    w3_ref, b3_ref,         # (Hp, Dp) bf16, (1, Dp) f32      -- proj_3
    lnh_w_ref, lnh_b_ref,   # (1, Hp) f32          -- ActivatorGatingUnit.norm (shared)
    out_ref,                # (TM, Dp) f32
    *, d_valid, h_valid, h_pad, n_sub, sub_rows,
):
    ln0_w = ln0_w_ref[...]
    ln0_b = ln0_b_ref[...]
    lnh_w = lnh_w_ref[...]
    lnh_b = lnh_b_ref[...]
    b12 = b12_ref[...]
    b3 = b3_ref[...]

    # Static unroll over independent row sub-blocks: gives the scheduler MXU work to
    # interleave with the previous sub-block's GELU / LayerNorm (VPU/EUP) phase.
    for s in range(n_sub):
        rows = pl.ds(s * sub_rows, sub_rows)
        x = x_ref[rows, :]
        xn = _layernorm(x, ln0_w, ln0_b, d_valid)

        # Fused u/v projection: one MXU pass (bf16 operands, f32 accumulation).
        z = jnp.dot(xn.astype(jnp.bfloat16), w12_ref[...],
                    preferred_element_type=jnp.float32) + b12
        u = _gelu_exact(z[:, :h_pad])
        u = _layernorm(u, lnh_w, lnh_b, h_valid)
        v = _layernorm(z[:, h_pad:], lnh_w, lnh_b, h_valid)

        g = (u * v).astype(jnp.bfloat16)
        out = jnp.dot(g, w3_ref[...], preferred_element_type=jnp.float32) + b3
        # Re-read x for the residual add: keeps the f32 input tile's live range short.
        out_ref[rows, :] = (out + x_ref[rows, :]).astype(out_ref.dtype)


# --------------------------------------------------------------------------------------
# One-time weight packing (hoisted out of the per-call path).
# --------------------------------------------------------------------------------------
def pack_params(params):
    """Pad feature dims to the MXU-friendly granularity, fuse W1|W2, store matmul
    weights in bf16. Call once; pass the result to activator_block()."""
    D, H = params["w1"].shape
    pad = _feature_pad()
    Dp = _round_up(D, pad)
    Hp = _round_up(H, pad)

    def pad2(a, r, c):
        return jnp.pad(a, ((0, r - a.shape[0]), (0, c - a.shape[1])))

    w12 = jnp.concatenate(
        [pad2(params["w1"], Dp, Hp), pad2(params["w2"], Dp, Hp)],
        axis=1).astype(jnp.bfloat16)
    b12 = jnp.concatenate(
        [pad2(params["b1"], 1, Hp), pad2(params["b2"], 1, Hp)],
        axis=1).astype(jnp.float32)
    return dict(
        w12=w12, b12=b12,
        w3=pad2(params["w3"], Hp, Dp).astype(jnp.bfloat16),
        b3=pad2(params["b3"], 1, Dp).astype(jnp.float32),
        ln0_w=pad2(params["ln0_w"], 1, Dp).astype(jnp.float32),
        ln0_b=pad2(params["ln0_b"], 1, Dp).astype(jnp.float32),
        lnh_w=pad2(params["lnh_w"], 1, Hp).astype(jnp.float32),
        lnh_b=pad2(params["lnh_b"], 1, Hp).astype(jnp.float32),
    )


# --------------------------------------------------------------------------------------
# Host wrapper.
# --------------------------------------------------------------------------------------
def activator_block(x, packed, *, d_model, d_ffn, tm=512, single_buffer_weights=True):
    """x: (B, S, d_model) float32. packed: dict from pack_params (padded bf16 weights)."""
    B, S, D = x.shape
    assert D == d_model
    H = d_ffn
    N = B * S
    Hp, Dp = packed["w3"].shape

    # ---- generation-aware tile size ------------------------------------------------
    TM = tm
    if Hp >= 4096:
        TM = min(TM, 128)
    elif Hp >= 2048:
        TM = min(TM, 256)
    TM = min(TM, _round_up(N, 8))
    trips = -(-N // TM)
    if trips > 1 and trips % 2 == 1 and TM >= 256:
        TM //= 2                       # even trip count -> both v7x TensorCores busy
        trips = -(-N // TM)
    Np = trips * TM

    n_sub = 2 if (TM % 16 == 0 and TM >= 32) else 1
    sub_rows = TM // n_sub

    # ---- activation slab: pad only when needed, alias the temp to the output -------
    xf = x.reshape(N, D).astype(jnp.float32)
    padded = (Np != N) or (Dp != D)
    if padded:
        xf = jnp.pad(xf, ((0, Np - N), (0, Dp - D)))
    io_alias = {0: 0} if padded else {}
    # TODO(synk): handle the ragged last row-tile with an in-kernel masked store so the
    # N % TM != 0 / D % pad != 0 cases also avoid the pad/slice round-trips.

    # ---- VMEM budget: single-buffered weights, double-buffered io tiles -------------
    capacity = _vmem_capacity_bytes()
    weight_bufs = 1 if single_buffer_weights else 2
    weight_bytes = weight_bufs * 2 * (Dp * 2 * Hp + Hp * Dp)              # bf16 mats
    vec_bytes = weight_bufs * 4 * (4 * Hp + 3 * Dp)                       # biases + LN
    io_bytes = 2 * 2 * TM * Dp * 4                                        # x/out, 2 bufs
    work_bytes = 6 * sub_rows * Hp * 4 + 2 * sub_rows * Dp * 4            # z,u,v,g,xn
    need = weight_bytes + vec_bytes + io_bytes + work_bytes
    budget = int(0.85 * capacity)
    if need > budget:
        # TODO(synk): column-tiled fallback streaming (Dp, tile) slices of W12 / W3 via
        # a second "arbitrary" grid axis when the weights exceed resident VMEM.
        raise NotImplementedError(
            f"resident weights + working set ~{need >> 20} MiB exceed the VMEM budget "
            f"({budget >> 20} MiB) on this TPU generation; d_ffn too large for the "
            "fully-resident variant of this kernel.")
    vmem_limit = min(max(int(1.25 * need), 32 << 20), budget)

    # ---- BlockSpecs ------------------------------------------------------------------
    def const_spec(shape):
        # Constant-index weights: request a single pipeline buffer when supported.
        if single_buffer_weights and hasattr(pl, "Buffered"):
            try:
                return pl.BlockSpec(shape, lambda i: (0, 0),
                                    pipeline_mode=pl.Buffered(1))
            except TypeError:
                pass
        return pl.BlockSpec(shape, lambda i: (0, 0))

    tile_spec = pl.BlockSpec((TM, Dp), lambda i: (i, 0))

    kernel = functools.partial(
        activator_block_kernel, d_valid=D, h_valid=H, h_pad=Hp,
        n_sub=n_sub, sub_rows=sub_rows)

    out = pl.pallas_call(
        kernel,
        out_shape=jax.ShapeDtypeStruct((Np, Dp), jnp.float32),
        grid=(trips,),
        in_specs=[
            tile_spec,                                       # x (token-tiled)
            const_spec((1, Dp)), const_spec((1, Dp)),        # ln0 w / b
            const_spec((Dp, 2 * Hp)), const_spec((1, 2 * Hp)),  # fused W12 / b12
            const_spec((Hp, Dp)), const_spec((1, Dp)),       # W3 / b3
            const_spec((1, Hp)), const_spec((1, Hp)),        # lnh w / b
        ],
        out_specs=tile_spec,
        input_output_aliases=io_alias,
        compiler_params=pltpu.CompilerParams(
            dimension_semantics=("parallel",),               # megacore-shard token axis
            vmem_limit_bytes=vmem_limit),
    )(xf, packed["ln0_w"], packed["ln0_b"], packed["w12"], packed["b12"],
      packed["w3"], packed["b3"], packed["lnh_w"], packed["lnh_b"])

    if padded:
        out = out[:N, :D]
    return out.reshape(B, S, D)


# --------------------------------------------------------------------------------------
# Synthetic parameters + pure-JAX reference.
# --------------------------------------------------------------------------------------
def init_params(key, d_model, d_ffn):
    """Linear weights ~ U(-1/sqrt(in), 1/sqrt(in)); LayerNorm weight=1 / bias=0."""
    ks = jax.random.split(key, 6)

    def lin(kw, kb, fan_in, fan_out):
        bound = 1.0 / jnp.sqrt(fan_in)
        w = jax.random.uniform(kw, (fan_in, fan_out), jnp.float32, -bound, bound)
        b = jax.random.uniform(kb, (1, fan_out), jnp.float32, -bound, bound)
        return w, b

    w1, b1 = lin(ks[0], ks[1], d_model, d_ffn)
    w2, b2 = lin(ks[2], ks[3], d_model, d_ffn)
    w3, b3 = lin(ks[4], ks[5], d_ffn, d_model)
    return dict(
        ln0_w=jnp.ones((1, d_model), jnp.float32),
        ln0_b=jnp.zeros((1, d_model), jnp.float32),
        lnh_w=jnp.ones((1, d_ffn), jnp.float32),
        lnh_b=jnp.zeros((1, d_ffn), jnp.float32),
        w1=w1, b1=b1, w2=w2, b2=b2, w3=w3, b3=b3,
    )


def reference(x, p):
    """Pure-JAX f32 reference of the PyTorch forward pass."""
    def ln(z, w, b):
        mu = jnp.mean(z, -1, keepdims=True)
        var = jnp.mean((z - mu) ** 2, -1, keepdims=True)
        return (z - mu) / jnp.sqrt(var + _LN_EPS) * w + b

    residual = x
    xn = ln(x, p["ln0_w"], p["ln0_b"])
    u = xn @ p["w1"] + p["b1"]
    u = 0.5 * u * (1.0 + lax.erf(u / jnp.sqrt(2.0)))
    u = ln(u, p["lnh_w"], p["lnh_b"])
    v = ln(xn @ p["w2"] + p["b2"], p["lnh_w"], p["lnh_b"])
    return (u * v) @ p["w3"] + p["b3"] + residual


if __name__ == "__main__":
    B, S, D_MODEL, D_FFN = 2, 8, 32, 64

    key = jax.random.PRNGKey(0)
    kx, kp = jax.random.split(key)
    x = jax.random.normal(kx, (B, S, D_MODEL), jnp.float32)
    params = init_params(kp, D_MODEL, D_FFN)
    packed = pack_params(params)          # one-time weight padding / bf16 packing

    run = functools.partial(activator_block, d_model=D_MODEL, d_ffn=D_FFN)
    try:
        out = jax.block_until_ready(
            jax.jit(functools.partial(run, single_buffer_weights=True))(x, packed))
    except Exception:
        # Fallback for JAX versions where single-buffered (pl.Buffered(1)) constant
        # BlockSpecs are not supported by the TPU pipeliner.
        out = jax.block_until_ready(
            jax.jit(functools.partial(run, single_buffer_weights=False))(x, packed))

    ref = reference(x, params)
    assert out.shape == (B, S, D_MODEL)
    assert bool(jnp.isfinite(out).all())
    err = float(jnp.max(jnp.abs(out - ref)))
    # bf16 MXU operands (f32 accumulation) -> slightly looser tolerance than pure f32.
    assert jnp.allclose(out, ref, atol=5e-2, rtol=5e-2), \
        f"mismatch vs reference, max abs err {err:.3e}"

    print("KERNEL_OK")
</pallas_src>

<mosaic_0001>
module attributes {stable_mosaic.version = 11 : i64} {
  func.func @activator_block_kernel(%arg0: i32, %arg1: memref<16x256xf32, #tpu.memory_space<vmem>>, %arg2: memref<1x256xf32, #tpu.memory_space<vmem>>, %arg3: memref<1x256xf32, #tpu.memory_space<vmem>>, %arg4: memref<256x512xbf16, #tpu.memory_space<vmem>>, %arg5: memref<1x512xf32, #tpu.memory_space<vmem>>, %arg6: memref<256x256xbf16, #tpu.memory_space<vmem>>, %arg7: memref<1x256xf32, #tpu.memory_space<vmem>>, %arg8: memref<1x256xf32, #tpu.memory_space<vmem>>, %arg9: memref<1x256xf32, #tpu.memory_space<vmem>>, %arg10: memref<16x256xf32, #tpu.memory_space<vmem>>) attributes {dimension_semantics = [#tpu.dimension_semantics<parallel>], iteration_bounds = array<i64: 1>, scalar_prefetch = 0 : i64, scratch_operands = 0 : i64, tpu.core_type = #tpu.core_type<tc>, window_params = [{transform_indices = @transform_0, window_bounds = array<i64: 16, 256>}, {pipeline_mode = #tpu.pipeline_mode<synchronous>, transform_indices = @transform_1, window_bounds = array<i64: 1, 256>}, {pipeline_mode = #tpu.pipeline_mode<synchronous>, transform_indices = @transform_2, window_bounds = array<i64: 1, 256>}, {pipeline_mode = #tpu.pipeline_mode<synchronous>, transform_indices = @transform_3, window_bounds = array<i64: 256, 512>}, {pipeline_mode = #tpu.pipeline_mode<synchronous>, transform_indices = @transform_4, window_bounds = array<i64: 1, 512>}, {pipeline_mode = #tpu.pipeline_mode<synchronous>, transform_indices = @transform_5, window_bounds = array<i64: 256, 256>}, {pipeline_mode = #tpu.pipeline_mode<synchronous>, transform_indices = @transform_6, window_bounds = array<i64: 1, 256>}, {pipeline_mode = #tpu.pipeline_mode<synchronous>, transform_indices = @transform_7, window_bounds = array<i64: 1, 256>}, {pipeline_mode = #tpu.pipeline_mode<synchronous>, transform_indices = @transform_8, window_bounds = array<i64: 1, 256>}, {transform_indices = @transform_9, window_bounds = array<i64: 16, 256>}]} {
    %c0 = arith.constant 0 : index
    %c0_0 = arith.constant 0 : index
    %0 = vector.load %arg2[%c0, %c0_0] : memref<1x256xf32, #tpu.memory_space<vmem>>, vector<1x256xf32>
    %c0_1 = arith.constant 0 : index
    %c0_2 = arith.constant 0 : index
    %1 = vector.load %arg3[%c0_1, %c0_2] : memref<1x256xf32, #tpu.memory_space<vmem>>, vector<1x256xf32>
    %c0_3 = arith.constant 0 : index
    %c0_4 = arith.constant 0 : index
    %2 = vector.load %arg8[%c0_3, %c0_4] : memref<1x256xf32, #tpu.memory_space<vmem>>, vector<1x256xf32>
    %c0_5 = arith.constant 0 : index
    %c0_6 = arith.constant 0 : index
    %3 = vector.load %arg9[%c0_5, %c0_6] : memref<1x256xf32, #tpu.memory_space<vmem>>, vector<1x256xf32>
    %c0_7 = arith.constant 0 : index
    %c0_8 = arith.constant 0 : index
    %4 = vector.load %arg5[%c0_7, %c0_8] : memref<1x512xf32, #tpu.memory_space<vmem>>, vector<1x512xf32>
    %c0_9 = arith.constant 0 : index
    %c0_10 = arith.constant 0 : index
    %5 = vector.load %arg7[%c0_9, %c0_10] : memref<1x256xf32, #tpu.memory_space<vmem>>, vector<1x256xf32>
    %c0_11 = arith.constant 0 : index
    %c0_12 = arith.constant 0 : index
    %6 = vector.load %arg1[%c0_11, %c0_12] : memref<16x256xf32, #tpu.memory_space<vmem>>, vector<16x256xf32>
    %cst = arith.constant dense<0.000000e+00> : vector<16xf32>
    %7 = vector.multi_reduction <add>, %6, %cst [1] : vector<16x256xf32> to vector<16xf32>
    %8 = vector.shape_cast %7 : vector<16xf32> to vector<16x1xf32>
    %cst_13 = arith.constant 3.125000e-02 : f32
    %9 = vector.broadcast %cst_13 : f32 to vector<16x1xf32>
    %10 = arith.mulf %8, %9 : vector<16x1xf32>
    %11 = arith.mulf %6, %6 : vector<16x256xf32>
    %cst_14 = arith.constant dense<0.000000e+00> : vector<16xf32>
    %12 = vector.multi_reduction <add>, %11, %cst_14 [1] : vector<16x256xf32> to vector<16xf32>
    %13 = vector.shape_cast %12 : vector<16xf32> to vector<16x1xf32>
    %cst_15 = arith.constant 3.125000e-02 : f32
    %14 = vector.broadcast %cst_15 : f32 to vector<16x1xf32>
    %15 = arith.mulf %13, %14 : vector<16x1xf32>
    %16 = arith.mulf %10, %10 : vector<16x1xf32>
    %17 = arith.subf %15, %16 : vector<16x1xf32>
    %cst_16 = arith.constant 0.000000e+00 : f32
    %18 = vector.broadcast %cst_16 : f32 to vector<16x1xf32>
    %19 = arith.maximumf %17, %18 : vector<16x1xf32>
    %20 = vector.broadcast %10 : vector<16x1xf32> to vector<16x256xf32>
    %21 = arith.subf %6, %20 : vector<16x256xf32>
    %cst_17 = arith.constant 9.99999974E-6 : f32
    %22 = vector.broadcast %cst_17 : f32 to vector<16x1xf32>
    %23 = arith.addf %19, %22 : vector<16x1xf32>
    %24 = math.rsqrt %23 : vector<16x1xf32>
    %25 = vector.broadcast %24 : vector<16x1xf32> to vector<16x256xf32>
    %26 = arith.mulf %21, %25 : vector<16x256xf32>
    %27 = vector.broadcast %0 : vector<1x256xf32> to vector<16x256xf32>
    %28 = arith.mulf %26, %27 : vector<16x256xf32>
    %29 = vector.broadcast %1 : vector<1x256xf32> to vector<16x256xf32>
    %30 = arith.addf %28, %29 : vector<16x256xf32>
    %31 = arith.truncf %30 : vector<16x256xf32> to vector<16x256xbf16>
    %c0_18 = arith.constant 0 : index
    %c0_19 = arith.constant 0 : index
    %32 = vector.load %arg4[%c0_18, %c0_19] : memref<256x512xbf16, #tpu.memory_space<vmem>>, vector<256x512xbf16>
    %cst_20 = arith.constant dense<0.000000e+00> : vector<16x512xf32>
    %33 = tpu.matmul %31, %32, %cst_20 {dimension_numbers = #tpu.dot_dimension_numbers<[1], [0], [0], [1], [0, 0, 1, 1], [], []>} : vector<16x256xbf16>, vector<256x512xbf16>, vector<16x512xf32> -> vector<16x512xf32>
    %34 = vector.broadcast %4 : vector<1x512xf32> to vector<16x512xf32>
    %35 = arith.addf %33, %34 : vector<16x512xf32>
    %36 = vector.extract_strided_slice %35 {offsets = [0, 0], sizes = [16, 256], strides = [1, 1]} : vector<16x512xf32> to vector<16x256xf32>
    %cst_21 = arith.constant 5.000000e-01 : f32
    %37 = vector.broadcast %cst_21 : f32 to vector<16x256xf32>
    %38 = arith.mulf %37, %36 : vector<16x256xf32>
    %cst_22 = arith.constant 0.707106769 : f32
    %39 = vector.broadcast %cst_22 : f32 to vector<16x256xf32>
    %40 = arith.mulf %36, %39 : vector<16x256xf32>
    %41 = math.erf %40 : vector<16x256xf32>
    %cst_23 = arith.constant 1.000000e+00 : f32
    %42 = vector.broadcast %cst_23 : f32 to vector<16x256xf32>
    %43 = arith.addf %42, %41 : vector<16x256xf32>
    %44 = arith.mulf %38, %43 : vector<16x256xf32>
    %cst_24 = arith.constant dense<0.000000e+00> : vector<16xf32>
    %45 = vector.multi_reduction <add>, %44, %cst_24 [1] : vector<16x256xf32> to vector<16xf32>
    %46 = vector.shape_cast %45 : vector<16xf32> to vector<16x1xf32>
    %cst_25 = arith.constant 1.562500e-02 : f32
    %47 = vector.broadcast %cst_25 : f32 to vector<16x1xf32>
    %48 = arith.mulf %46, %47 : vector<16x1xf32>
    %49 = arith.mulf %44, %44 : vector<16x256xf32>
    %cst_26 = arith.constant dense<0.000000e+00> : vector<16xf32>
    %50 = vector.multi_reduction <add>, %49, %cst_26 [1] : vector<16x256xf32> to vector<16xf32>
    %51 = vector.shape_cast %50 : vector<16xf32> to vector<16x1xf32>
    %cst_27 = arith.constant 1.562500e-02 : f32
    %52 = vector.broadcast %cst_27 : f32 to vector<16x1xf32>
    %53 = arith.mulf %51, %52 : vector<16x1xf32>
    %54 = arith.mulf %48, %48 : vector<16x1xf32>
    %55 = arith.subf %53, %54 : vector<16x1xf32>
    %cst_28 = arith.constant 0.000000e+00 : f32
    %56 = vector.broadcast %cst_28 : f32 to vector<16x1xf32>
    %57 = arith.maximumf %55, %56 : vector<16x1xf32>
    %58 = vector.broadcast %48 : vector<16x1xf32> to vector<16x256xf32>
    %59 = arith.subf %44, %58 : vector<16x256xf32>
    %cst_29 = arith.constant 9.99999974E-6 : f32
    %60 = vector.broadcast %cst_29 : f32 to vector<16x1xf32>
    %61 = arith.addf %57, %60 : vector<16x1xf32>
    %62 = math.rsqrt %61 : vector<16x1xf32>
    %63 = vector.broadcast %62 : vector<16x1xf32> to vector<16x256xf32>
    %64 = arith.mulf %59, %63 : vector<16x256xf32>
    %65 = vector.broadcast %2 : vector<1x256xf32> to vector<16x256xf32>
    %66 = arith.mulf %64, %65 : vector<16x256xf32>
    %67 = vector.broadcast %3 : vector<1x256xf32> to vector<16x256xf32>
    %68 = arith.addf %66, %67 : vector<16x256xf32>
    %69 = vector.extract_strided_slice %35 {offsets = [0, 256], sizes = [16, 256], strides = [1, 1]} : vector<16x512xf32> to vector<16x256xf32>
    %cst_30 = arith.constant dense<0.000000e+00> : vector<16xf32>
    %70 = vector.multi_reduction <add>, %69, %cst_30 [1] : vector<16x256xf32> to vector<16xf32>
    %71 = vector.shape_cast %70 : vector<16xf32> to vector<16x1xf32>
    %cst_31 = arith.constant 1.562500e-02 : f32
    %72 = vector.broadcast %cst_31 : f32 to vector<16x1xf32>
    %73 = arith.mulf %71, %72 : vector<16x1xf32>
    %74 = arith.mulf %69, %69 : vector<16x256xf32>
    %cst_32 = arith.constant dense<0.000000e+00> : vector<16xf32>
    %75 = vector.multi_reduction <add>, %74, %cst_32 [1] : vector<16x256xf32> to vector<16xf32>
    %76 = vector.shape_cast %75 : vector<16xf32> to vector<16x1xf32>
    %cst_33 = arith.constant 1.562500e-02 : f32
    %77 = vector.broadcast %cst_33 : f32 to vector<16x1xf32>
    %78 = arith.mulf %76, %77 : vector<16x1xf32>
    %79 = arith.mulf %73, %73 : vector<16x1xf32>
    %80 = arith.subf %78, %79 : vector<16x1xf32>
    %cst_34 = arith.constant 0.000000e+00 : f32
    %81 = vector.broadcast %cst_34 : f32 to vector<16x1xf32>
    %82 = arith.maximumf %80, %81 : vector<16x1xf32>
    %83 = vector.broadcast %73 : vector<16x1xf32> to vector<16x256xf32>
    %84 = arith.subf %69, %83 : vector<16x256xf32>
    %cst_35 = arith.constant 9.99999974E-6 : f32
    %85 = vector.broadcast %cst_35 : f32 to vector<16x1xf32>
    %86 = arith.addf %82, %85 : vector<16x1xf32>
    %87 = math.rsqrt %86 : vector<16x1xf32>
    %88 = vector.broadcast %87 : vector<16x1xf32> to vector<16x256xf32>
    %89 = arith.mulf %84, %88 : vector<16x256xf32>
    %90 = vector.broadcast %2 : vector<1x256xf32> to vector<16x256xf32>
    %91 = arith.mulf %89, %90 : vector<16x256xf32>
    %92 = vector.broadcast %3 : vector<1x256xf32> to vector<16x256xf32>
    %93 = arith.addf %91, %92 : vector<16x256xf32>
    %94 = arith.mulf %68, %93 : vector<16x256xf32>
    %95 = arith.truncf %94 : vector<16x256xf32> to vector<16x256xbf16>
    %c0_36 = arith.constant 0 : index
    %c0_37 = arith.constant 0 : index
    %96 = vector.load %arg6[%c0_36, %c0_37] : memref<256x256xbf16, #tpu.memory_space<vmem>>, vector<256x256xbf16>
    %cst_38 = arith.constant dense<0.000000e+00> : vector<16x256xf32>
    %97 = tpu.matmul %95, %96, %cst_38 {dimension_numbers = #tpu.dot_dimension_numbers<[1], [0], [0], [1], [0, 0, 1, 1], [], []>} : vector<16x256xbf16>, vector<256x256xbf16>, vector<16x256xf32> -> vector<16x256xf32>
    %98 = vector.broadcast %5 : vector<1x256xf32> to vector<16x256xf32>
    %99 = arith.addf %97, %98 : vector<16x256xf32>
    %c0_39 = arith.constant 0 : index
    %c0_40 = arith.constant 0 : index
    %100 = vector.load %arg1[%c0_39, %c0_40] : memref<16x256xf32, #tpu.memory_space<vmem>>, vector<16x256xf32>
    %101 = arith.addf %99, %100 : vector<16x256xf32>
    %c0_41 = arith.constant 0 : index
    %c0_42 = arith.constant 0 : index
    %102 = vector.load %arg10[%c0_41, %c0_42] : memref<16x256xf32, #tpu.memory_space<vmem>>, vector<16x256xf32>
    tpu.vector_store %arg10[%c0_41, %c0_42], %101 {strides = array<i32>} : memref<16x256xf32, #tpu.memory_space<vmem>>, vector<16x256xf32>,
    return
  }
  func.func @transform_0(%arg0: i32) -> (i32, i32) {
    %c0_i32 = arith.constant 0 : i32
    %c0_i32_0 = arith.constant 0 : i32
    return %arg0, %c0_i32 : i32, i32
  }
  func.func @transform_1(%arg0: i32) -> (i32, i32) {
    %c0_i32 = arith.constant 0 : i32
    %c0_i32_0 = arith.constant 0 : i32
    %c0_i32_1 = arith.constant 0 : i32
    return %c0_i32, %c0_i32_0 : i32, i32
  }
  func.func @transform_2(%arg0: i32) -> (i32, i32) {
    %c0_i32 = arith.constant 0 : i32
    %c0_i32_0 = arith.constant 0 : i32
    %c0_i32_1 = arith.constant 0 : i32
    return %c0_i32, %c0_i32_0 : i32, i32
  }
  func.func @transform_3(%arg0: i32) -> (i32, i32) {
    %c0_i32 = arith.constant 0 : i32
    %c0_i32_0 = arith.constant 0 : i32
    %c0_i32_1 = arith.constant 0 : i32
    return %c0_i32, %c0_i32_0 : i32, i32
  }
  func.func @transform_4(%arg0: i32) -> (i32, i32) {
    %c0_i32 = arith.constant 0 : i32
    %c0_i32_0 = arith.constant 0 : i32
    %c0_i32_1 = arith.constant 0 : i32
    return %c0_i32, %c0_i32_0 : i32, i32
  }
  func.func @transform_5(%arg0: i32) -> (i32, i32) {
    %c0_i32 = arith.constant 0 : i32
    %c0_i32_0 = arith.constant 0 : i32
    %c0_i32_1 = arith.constant 0 : i32
    return %c0_i32, %c0_i32_0 : i32, i32
  }
  func.func @transform_6(%arg0: i32) -> (i32, i32) {
    %c0_i32 = arith.constant 0 : i32
    %c0_i32_0 = arith.constant 0 : i32
    %c0_i32_1 = arith.constant 0 : i32
    return %c0_i32, %c0_i32_0 : i32, i32
  }
  func.func @transform_7(%arg0: i32) -> (i32, i32) {
    %c0_i32 = arith.constant 0 : i32
    %c0_i32_0 = arith.constant 0 : i32
    %c0_i32_1 = arith.constant 0 : i32
    return %c0_i32, %c0_i32_0 : i32, i32
  }
  func.func @transform_8(%arg0: i32) -> (i32, i32) {
    %c0_i32 = arith.constant 0 : i32
    %c0_i32_0 = arith.constant 0 : i32
    %c0_i32_1 = arith.constant 0 : i32
    return %c0_i32, %c0_i32_0 : i32, i32
  }
  func.func @transform_9(%arg0: i32) -> (i32, i32) {
    %c0_i32 = arith.constant 0 : i32
    %c0_i32_0 = arith.constant 0 : i32
    return %arg0, %c0_i32 : i32, i32
  }
}

module attributes {stable_mosaic.version = 11 : i64} {
  func.func @activator_block_kernel(%arg0: i32, %arg1: memref<16x256xf32, #tpu.memory_space<vmem>>, %arg2: memref<1x256xf32, #tpu.memory_space<vmem>>, %arg3: memref<1x256xf32, #tpu.memory_space<vmem>>, %arg4: memref<256x512xbf16, #tpu.memory_space<vmem>>, %arg5: memref<1x512xf32, #tpu.memory_space<vmem>>, %arg6: memref<256x256xbf16, #tpu.memory_space<vmem>>, %arg7: memref<1x256xf32, #tpu.memory_space<vmem>>, %arg8: memref<1x256xf32, #tpu.memory_space<vmem>>, %arg9: memref<1x256xf32, #tpu.memory_space<vmem>>, %arg10: memref<16x256xf32, #tpu.memory_space<vmem>>) attributes {dimension_semantics = [#tpu.dimension_semantics<parallel>], iteration_bounds = array<i64: 1>, scalar_prefetch = 0 : i64, scratch_operands = 0 : i64, tpu.core_type = #tpu.core_type<tc>, window_params = [{transform_indices = @transform_0, window_bounds = array<i64: 16, 256>}, {pipeline_mode = #tpu.pipeline_mode<synchronous>, transform_indices = @transform_1, window_bounds = array<i64: 1, 256>}, {pipeline_mode = #tpu.pipeline_mode<synchronous>, transform_indices = @transform_2, window_bounds = array<i64: 1, 256>}, {pipeline_mode = #tpu.pipeline_mode<synchronous>, transform_indices = @transform_3, window_bounds = array<i64: 256, 512>}, {pipeline_mode = #tpu.pipeline_mode<synchronous>, transform_indices = @transform_4, window_bounds = array<i64: 1, 512>}, {pipeline_mode = #tpu.pipeline_mode<synchronous>, transform_indices = @transform_5, window_bounds = array<i64: 256, 256>}, {pipeline_mode = #tpu.pipeline_mode<synchronous>, transform_indices = @transform_6, window_bounds = array<i64: 1, 256>}, {pipeline_mode = #tpu.pipeline_mode<synchronous>, transform_indices = @transform_7, window_bounds = array<i64: 1, 256>}, {pipeline_mode = #tpu.pipeline_mode<synchronous>, transform_indices = @transform_8, window_bounds = array<i64: 1, 256>}, {transform_indices = @transform_9, window_bounds = array<i64: 16, 256>}]} {
    %c0 = arith.constant 0 : index
    %c0_0 = arith.constant 0 : index
    %0 = vector.load %arg2[%c0, %c0_0] : memref<1x256xf32, #tpu.memory_space<vmem>>, vector<1x256xf32>
    %c0_1 = arith.constant 0 : index
    %c0_2 = arith.constant 0 : index
    %1 = vector.load %arg3[%c0_1, %c0_2] : memref<1x256xf32, #tpu.memory_space<vmem>>, vector<1x256xf32>
    %c0_3 = arith.constant 0 : index
    %c0_4 = arith.constant 0 : index
    %2 = vector.load %arg8[%c0_3, %c0_4] : memref<1x256xf32, #tpu.memory_space<vmem>>, vector<1x256xf32>
    %c0_5 = arith.constant 0 : index
    %c0_6 = arith.constant 0 : index
    %3 = vector.load %arg9[%c0_5, %c0_6] : memref<1x256xf32, #tpu.memory_space<vmem>>, vector<1x256xf32>
    %c0_7 = arith.constant 0 : index
    %c0_8 = arith.constant 0 : index
    %4 = vector.load %arg5[%c0_7, %c0_8] : memref<1x512xf32, #tpu.memory_space<vmem>>, vector<1x512xf32>
    %c0_9 = arith.constant 0 : index
    %c0_10 = arith.constant 0 : index
    %5 = vector.load %arg7[%c0_9, %c0_10] : memref<1x256xf32, #tpu.memory_space<vmem>>, vector<1x256xf32>
    %c0_11 = arith.constant 0 : index
    %c0_12 = arith.constant 0 : index
    %6 = vector.load %arg1[%c0_11, %c0_12] : memref<16x256xf32, #tpu.memory_space<vmem>>, vector<16x256xf32>
    %cst = arith.constant dense<0.000000e+00> : vector<16xf32>
    %7 = vector.multi_reduction <add>, %6, %cst [1] : vector<16x256xf32> to vector<16xf32>
    %8 = vector.shape_cast %7 : vector<16xf32> to vector<16x1xf32>
    %cst_13 = arith.constant 3.125000e-02 : f32
    %9 = vector.broadcast %cst_13 : f32 to vector<16x1xf32>
    %10 = arith.mulf %8, %9 : vector<16x1xf32>
    %11 = arith.mulf %6, %6 : vector<16x256xf32>
    %cst_14 = arith.constant dense<0.000000e+00> : vector<16xf32>
    %12 = vector.multi_reduction <add>, %11, %cst_14 [1] : vector<16x256xf32> to vector<16xf32>
    %13 = vector.shape_cast %12 : vector<16xf32> to vector<16x1xf32>
    %cst_15 = arith.constant 3.125000e-02 : f32
    %14 = vector.broadcast %cst_15 : f32 to vector<16x1xf32>
    %15 = arith.mulf %13, %14 : vector<16x1xf32>
    %16 = arith.mulf %10, %10 : vector<16x1xf32>
    %17 = arith.subf %15, %16 : vector<16x1xf32>
    %cst_16 = arith.constant 0.000000e+00 : f32
    %18 = vector.broadcast %cst_16 : f32 to vector<16x1xf32>
    %19 = arith.maximumf %17, %18 : vector<16x1xf32>
    %20 = vector.broadcast %10 : vector<16x1xf32> to vector<16x256xf32>
    %21 = arith.subf %6, %20 : vector<16x256xf32>
    %cst_17 = arith.constant 9.99999974E-6 : f32
    %22 = vector.broadcast %cst_17 : f32 to vector<16x1xf32>
    %23 = arith.addf %19, %22 : vector<16x1xf32>
    %24 = math.rsqrt %23 : vector<16x1xf32>
    %25 = vector.broadcast %24 : vector<16x1xf32> to vector<16x256xf32>
    %26 = arith.mulf %21, %25 : vector<16x256xf32>
    %27 = vector.broadcast %0 : vector<1x256xf32> to vector<16x256xf32>
    %28 = arith.mulf %26, %27 : vector<16x256xf32>
    %29 = vector.broadcast %1 : vector<1x256xf32> to vector<16x256xf32>
    %30 = arith.addf %28, %29 : vector<16x256xf32>
    %31 = arith.truncf %30 : vector<16x256xf32> to vector<16x256xbf16>
    %c0_18 = arith.constant 0 : index
    %c0_19 = arith.constant 0 : index
    %32 = vector.load %arg4[%c0_18, %c0_19] : memref<256x512xbf16, #tpu.memory_space<vmem>>, vector<256x512xbf16>
    %cst_20 = arith.constant dense<0.000000e+00> : vector<16x512xf32>
    %33 = tpu.matmul %31, %32, %cst_20 {dimension_numbers = #tpu.dot_dimension_numbers<[1], [0], [0], [1], [0, 0, 1, 1], [], []>} : vector<16x256xbf16>, vector<256x512xbf16>, vector<16x512xf32> -> vector<16x512xf32>
    %34 = vector.broadcast %4 : vector<1x512xf32> to vector<16x512xf32>
    %35 = arith.addf %33, %34 : vector<16x512xf32>
    %36 = vector.extract_strided_slice %35 {offsets = [0, 0], sizes = [16, 256], strides = [1, 1]} : vector<16x512xf32> to vector<16x256xf32>
    %cst_21 = arith.constant 5.000000e-01 : f32
    %37 = vector.broadcast %cst_21 : f32 to vector<16x256xf32>
    %38 = arith.mulf %37, %36 : vector<16x256xf32>
    %cst_22 = arith.constant 0.707106769 : f32
    %39 = vector.broadcast %cst_22 : f32 to vector<16x256xf32>
    %40 = arith.mulf %36, %39 : vector<16x256xf32>
    %41 = math.erf %40 : vector<16x256xf32>
    %cst_23 = arith.constant 1.000000e+00 : f32
    %42 = vector.broadcast %cst_23 : f32 to vector<16x256xf32>
    %43 = arith.addf %42, %41 : vector<16x256xf32>
    %44 = arith.mulf %38, %43 : vector<16x256xf32>
    %cst_24 = arith.constant dense<0.000000e+00> : vector<16xf32>
    %45 = vector.multi_reduction <add>, %44, %cst_24 [1] : vector<16x256xf32> to vector<16xf32>
    %46 = vector.shape_cast %45 : vector<16xf32> to vector<16x1xf32>
    %cst_25 = arith.constant 1.562500e-02 : f32
    %47 = vector.broadcast %cst_25 : f32 to vector<16x1xf32>
    %48 = arith.mulf %46, %47 : vector<16x1xf32>
    %49 = arith.mulf %44, %44 : vector<16x256xf32>
    %cst_26 = arith.constant dense<0.000000e+00> : vector<16xf32>
    %50 = vector.multi_reduction <add>, %49, %cst_26 [1] : vector<16x256xf32> to vector<16xf32>
    %51 = vector.shape_cast %50 : vector<16xf32> to vector<16x1xf32>
    %cst_27 = arith.constant 1.562500e-02 : f32
    %52 = vector.broadcast %cst_27 : f32 to vector<16x1xf32>
    %53 = arith.mulf %51, %52 : vector<16x1xf32>
    %54 = arith.mulf %48, %48 : vector<16x1xf32>
    %55 = arith.subf %53, %54 : vector<16x1xf32>
    %cst_28 = arith.constant 0.000000e+00 : f32
    %56 = vector.broadcast %cst_28 : f32 to vector<16x1xf32>
    %57 = arith.maximumf %55, %56 : vector<16x1xf32>
    %58 = vector.broadcast %48 : vector<16x1xf32> to vector<16x256xf32>
    %59 = arith.subf %44, %58 : vector<16x256xf32>
    %cst_29 = arith.constant 9.99999974E-6 : f32
    %60 = vector.broadcast %cst_29 : f32 to vector<16x1xf32>
    %61 = arith.addf %57, %60 : vector<16x1xf32>
    %62 = math.rsqrt %61 : vector<16x1xf32>
    %63 = vector.broadcast %62 : vector<16x1xf32> to vector<16x256xf32>
    %64 = arith.mulf %59, %63 : vector<16x256xf32>
    %65 = vector.broadcast %2 : vector<1x256xf32> to vector<16x256xf32>
    %66 = arith.mulf %64, %65 : vector<16x256xf32>
    %67 = vector.broadcast %3 : vector<1x256xf32> to vector<16x256xf32>
    %68 = arith.addf %66, %67 : vector<16x256xf32>
    %69 = vector.extract_strided_slice %35 {offsets = [0, 256], sizes = [16, 256], strides = [1, 1]} : vector<16x512xf32> to vector<16x256xf32>
    %cst_30 = arith.constant dense<0.000000e+00> : vector<16xf32>
    %70 = vector.multi_reduction <add>, %69, %cst_30 [1] : vector<16x256xf32> to vector<16xf32>
    %71 = vector.shape_cast %70 : vector<16xf32> to vector<16x1xf32>
    %cst_31 = arith.constant 1.562500e-02 : f32
    %72 = vector.broadcast %cst_31 : f32 to vector<16x1xf32>
    %73 = arith.mulf %71, %72 : vector<16x1xf32>
    %74 = arith.mulf %69, %69 : vector<16x256xf32>
    %cst_32 = arith.constant dense<0.000000e+00> : vector<16xf32>
    %75 = vector.multi_reduction <add>, %74, %cst_32 [1] : vector<16x256xf32> to vector<16xf32>
    %76 = vector.shape_cast %75 : vector<16xf32> to vector<16x1xf32>
    %cst_33 = arith.constant 1.562500e-02 : f32
    %77 = vector.broadcast %cst_33 : f32 to vector<16x1xf32>
    %78 = arith.mulf %76, %77 : vector<16x1xf32>
    %79 = arith.mulf %73, %73 : vector<16x1xf32>
    %80 = arith.subf %78, %79 : vector<16x1xf32>
    %cst_34 = arith.constant 0.000000e+00 : f32
    %81 = vector.broadcast %cst_34 : f32 to vector<16x1xf32>
    %82 = arith.maximumf %80, %81 : vector<16x1xf32>
    %83 = vector.broadcast %73 : vector<16x1xf32> to vector<16x256xf32>
    %84 = arith.subf %69, %83 : vector<16x256xf32>
    %cst_35 = arith.constant 9.99999974E-6 : f32
    %85 = vector.broadcast %cst_35 : f32 to vector<16x1xf32>
    %86 = arith.addf %82, %85 : vector<16x1xf32>
    %87 = math.rsqrt %86 : vector<16x1xf32>
    %88 = vector.broadcast %87 : vector<16x1xf32> to vector<16x256xf32>
    %89 = arith.mulf %84, %88 : vector<16x256xf32>
    %90 = vector.broadcast %2 : vector<1x256xf32> to vector<16x256xf32>
    %91 = arith.mulf %89, %90 : vector<16x256xf32>
    %92 = vector.broadcast %3 : vector<1x256xf32> to vector<16x256xf32>
    %93 = arith.addf %91, %92 : vector<16x256xf32>
    %94 = arith.mulf %68, %93 : vector<16x256xf32>
    %95 = arith.truncf %94 : vector<16x256xf32> to vector<16x256xbf16>
    %c0_36 = arith.constant 0 : index
    %c0_37 = arith.constant 0 : index
    %96 = vector.load %arg6[%c0_36, %c0_37] : memref<256x256xbf16, #tpu.memory_space<vmem>>, vector<256x256xbf16>
    %cst_38 = arith.constant dense<0.000000e+00> : vector<16x256xf32>
    %97 = tpu.matmul %95, %96, %cst_38 {dimension_numbers = #tpu.dot_dimension_numbers<[1], [0], [0], [1], [0, 0, 1, 1], [], []>} : vector<16x256xbf16>, vector<256x256xbf16>, vector<16x256xf32> -> vector<16x256xf32>
    %98 = vector.broadcast %5 : vector<1x256xf32> to vector<16x256xf32>
    %99 = arith.addf %97, %98 : vector<16x256xf32>
    %c0_39 = arith.constant 0 : index
    %c0_40 = arith.constant 0 : index
    %100 = vector.load %arg1[%c0_39, %c0_40] : memref<16x256xf32, #tpu.memory_space<vmem>>, vector<16x256xf32>
    %101 = arith.addf %99, %100 : vector<16x256xf32>
    %c0_41 = arith.constant 0 : index
    %c0_42 = arith.constant 0 : index
    %102 = vector.load %arg10[%c0_41, %c0_42] : memref<16x256xf32, #tpu.memory_space<vmem>>, vector<16x256xf32>
    tpu.vector_store %arg10[%c0_41, %c0_42], %101 {strides = array<i32>} : memref<16x256xf32, #tpu.memory_space<vmem>>, vector<16x256xf32>,
    return
  }
  func.func @transform_0(%arg0: i32) -> (i32, i32) {
    %c0_i32 = arith.constant 0 : i32
    %c0_i32_0 = arith.constant 0 : i32
    return %arg0, %c0_i32 : i32, i32
  }
  func.func @transform_1(%arg0: i32) -> (i32, i32) {
    %c0_i32 = arith.constant 0 : i32
    %c0_i32_0 = arith.constant 0 : i32
    %c0_i32_1 = arith.constant 0 : i32
    return %c0_i32, %c0_i32_0 : i32, i32
  }
  func.func @transform_2(%arg0: i32) -> (i32, i32) {
    %c0_i32 = arith.constant 0 : i32
    %c0_i32_0 = arith.constant 0 : i32
    %c0_i32_1 = arith.constant 0 : i32
    return %c0_i32, %c0_i32_0 : i32, i32
  }
  func.func @transform_3(%arg0: i32) -> (i32, i32) {
    %c0_i32 = arith.constant 0 : i32
    %c0_i32_0 = arith.constant 0 : i32
    %c0_i32_1 = arith.constant 0 : i32
    return %c0_i32, %c0_i32_0 : i32, i32
  }
  func.func @transform_4(%arg0: i32) -> (i32, i32) {
    %c0_i32 = arith.constant 0 : i32
    %c0_i32_0 = arith.constant 0 : i32
    %c0_i32_1 = arith.constant 0 : i32
    return %c0_i32, %c0_i32_0 : i32, i32
  }
  func.func @transform_5(%arg0: i32) -> (i32, i32) {
    %c0_i32 = arith.constant 0 : i32
    %c0_i32_0 = arith.constant 0 : i32
    %c0_i32_1 = arith.constant 0 : i32
    return %c0_i32, %c0_i32_0 : i32, i32
  }
  func.func @transform_6(%arg0: i32) -> (i32, i32) {
    %c0_i32 = arith.constant 0 : i32
    %c0_i32_0 = arith.constant 0 : i32
    %c0_i32_1 = arith.constant 0 : i32
    return %c0_i32, %c0_i32_0 : i32, i32
  }
  func.func @transform_7(%arg0: i32) -> (i32, i32) {
    %c0_i32 = arith.constant 0 : i32
    %c0_i32_0 = arith.constant 0 : i32
    %c0_i32_1 = arith.constant 0 : i32
    return %c0_i32, %c0_i32_0 : i32, i32
  }
  func.func @transform_8(%arg0: i32) -> (i32, i32) {
    %c0_i32 = arith.constant 0 : i32
    %c0_i32_0 = arith.constant 0 : i32
    %c0_i32_1 = arith.constant 0 : i32
    return %c0_i32, %c0_i32_0 : i32, i32
  }
  func.func @transform_9(%arg0: i32) -> (i32, i32) {
    %c0_i32 = arith.constant 0 : i32
    %c0_i32_0 = arith.constant 0 : i32
    return %arg0, %c0_i32 : i32, i32
  }
}

</mosaic_0001>

<llo_original>
// kernel: activator_block.1
$region0: #{activator_block.1}
  #allocation0 [shape = 'u32[]', space=smem, size = 0x4, offset = 0x4, fixed_abs, tag = 'smem constant byte address 0x4 - core index']
  #allocation1 [shape = 'u32[144,128]{1,0:T(1,128)}', space=vmem, size = 0x12000, scoped, tag = 'internal scratch']
  %s0 = inlined_call_operand.vmem [shape: f32[16,256], index: 0, kind: input, shape index: {}, may-alias: {0,9}]
  %s1 = inlined_call_operand.vmem [shape: f32[1,256], index: 1, kind: input, shape index: {}]
  %s2 = inlined_call_operand.vmem [shape: f32[1,256], index: 2, kind: input, shape index: {}]
  %s3 = inlined_call_operand.hbm [shape: bf16[256,512], index: 3, kind: input, shape index: {}]
  %s4 = inlined_call_operand.vmem [shape: f32[1,512], index: 4, kind: input, shape index: {}]
  %s5 = inlined_call_operand.hbm [shape: bf16[256,256], index: 5, kind: input, shape index: {}]
  %s6 = inlined_call_operand.vmem [shape: f32[1,256], index: 6, kind: input, shape index: {}]
  %s7 = inlined_call_operand.vmem [shape: f32[1,256], index: 7, kind: input, shape index: {}]
  %s8 = inlined_call_operand.vmem [shape: f32[1,256], index: 8, kind: input, shape index: {}]
  %s9 = inlined_call_operand.vmem [shape: f32[16,256], index: 9, kind: output, shape index: {}, may-alias: {0,9}]
  %s10 = sld [smem:[#allocation0]]
  $region54: #{activator_block.1} parent=0
    _
  %s12 = ssub.s32 1, %s10
  %s13 = scalar_select 0, %s12, %s10
  $region1: #{activator_block.1} parent=0
    #allocation2 [shape = 'u8[262144]{0}', space=vmem, size = 0x40000, scoped, tag = 'input window, operand 3, single buffered']
    #allocation3 [shape = 's32[1]{0}', space=sflag, size = 0x4, scoped, tag = 'scoped memory for activator_block.1']
    #allocation4 [shape = 'u8[131072]{0}', space=vmem, size = 0x20000, scoped, tag = 'input window, operand 5, single buffered']
    #allocation5 [shape = 's32[1]{0}', space=sflag, size = 0x4, scoped, tag = 'scoped memory for activator_block.1']
    %14 = vsyncpa [#allocation3], 0
    %15 = vsyncpa [#allocation5], 0
    // Predicated region
    $region2: #{activator_block.1} parent=1 // pred_check
      _
    $region3: #{activator_block.1} parent=1 // pred_check_branch
      %17 = sbr.rel (0) target = $region5
    $region4: #{activator_block.1} parent=1 // pred_region
      _
    $region5: #{activator_block.1} parent=1 // pred_fallthru
      _
    // Predicated region
    $region6: #{activator_block.1} parent=1 // pred_check
      _
    $region7: #{activator_block.1} parent=1 // pred_check_branch
      %19 = sbr.rel (0) target = $region9
    $region8: #{activator_block.1} parent=1 // pred_region
      _
    $region9: #{activator_block.1} parent=1 // pred_fallthru
      _
    // Predicated region
    $region10: #{activator_block.1} parent=1 // pred_check
      _
    $region11: #{activator_block.1} parent=1 // pred_check_branch
      %21 = sbr.rel (0) target = $region13
    $region12: #{activator_block.1} parent=1 // pred_region
      _
    $region13: #{activator_block.1} parent=1 // pred_fallthru
      _
    // Predicated region
    $region14: #{activator_block.1} parent=1 // pred_check
      _
    $region15: #{activator_block.1} parent=1 // pred_check_branch
      %23 = sbr.rel (0) target = $region17
    $region16: #{activator_block.1} parent=1 // pred_region
      %s25 = ssub.s32 8192, 8192
      %26 = vsyncadd [#allocation3], %s25
      %s27 = sshll.u32 [#allocation2], 4
      %s28 = int_to_ptr.vmem [resolvable:$true] %s27
      %33 = dma.hbm_to_vmem [thread:$0]  %s3, 8192, %s28, [#allocation3], 256, 256, 16
    $region17: #{activator_block.1} parent=1 // pred_fallthru
      _
    // Predicated region
    $region18: #{activator_block.1} parent=1 // pred_check
      _
    $region19: #{activator_block.1} parent=1 // pred_check_branch
      %35 = sbr.rel (0) target = $region21
    $region20: #{activator_block.1} parent=1 // pred_region
      _
    $region21: #{activator_block.1} parent=1 // pred_fallthru
      _
    // Predicated region
    $region22: #{activator_block.1} parent=1 // pred_check
      _
    $region23: #{activator_block.1} parent=1 // pred_check_branch
      %37 = sbr.rel (0) target = $region25
    $region24: #{activator_block.1} parent=1 // pred_region
      %s39 = ssub.s32 4096, 4096
      %40 = vsyncadd [#allocation5], %s39
      %s41 = sshll.u32 [#allocation4], 4
      %s42 = int_to_ptr.vmem [resolvable:$true] %s41
      %47 = dma.hbm_to_vmem [thread:$0]  %s5, 4096, %s42, [#allocation5], 128, 128, 8
    $region25: #{activator_block.1} parent=1 // pred_fallthru
      _
    // Predicated region
    $region26: #{activator_block.1} parent=1 // pred_check
      _
    $region27: #{activator_block.1} parent=1 // pred_check_branch
      %49 = sbr.rel (0) target = $region29
    $region28: #{activator_block.1} parent=1 // pred_region
      _
    $region29: #{activator_block.1} parent=1 // pred_fallthru
      _
    // Predicated region
    $region30: #{activator_block.1} parent=1 // pred_check
      _
    $region31: #{activator_block.1} parent=1 // pred_check_branch
      %51 = sbr.rel (0) target = $region33
    $region32: #{activator_block.1} parent=1 // pred_region
      _
    $region33: #{activator_block.1} parent=1 // pred_fallthru
      _
    // Predicated region
    $region34: #{activator_block.1} parent=1 // pred_check
      _
    $region35: #{activator_block.1} parent=1 // pred_check_branch
      %53 = sbr.rel (0) target = $region37
    $region36: #{activator_block.1} parent=1 // pred_region
      _
    $region37: #{activator_block.1} parent=1 // pred_fallthru
      _
    // Predicated region
    $region38: #{activator_block.1} parent=1 // pred_check
      _
    $region39: #{activator_block.1} parent=1 // pred_check_branch
      %55 = sbr.rel (0) target = $region41
    $region40: #{activator_block.1} parent=1 // pred_region
      %56 = dma.done [#allocation3], 8192
    $region41: #{activator_block.1} parent=1 // pred_fallthru
      _
    // Predicated region
    $region42: #{activator_block.1} parent=1 // pred_check
      _
    $region43: #{activator_block.1} parent=1 // pred_check_branch
      %58 = sbr.rel (0) target = $region45
    $region44: #{activator_block.1} parent=1 // pred_region
      %59 = dma.done [#allocation5], 4096
    $region45: #{activator_block.1} parent=1 // pred_fallthru
      _
    %v60 = vld [vmem:[%s1] sm:$0x3]
    %v61 = vld [vmem:[%s2] sm:$0x3]
    %v62 = vld [vmem:[%s7] sm:$0x3]
    %v63 = vld [vmem:[%s8] sm:$0x3]
    %v64 = vld [vmem:[%s4] sm:$0xf]
    %v65 = vld [vmem:[%s6] sm:$0x3]
    %v66 = vld [vmem:[%s0] sm:$0xff]
    %v67 = vld [vmem:[%s0 + $0x8] sm:$0xff]
    %v68 = vld [vmem:[%s0 + $0x10] sm:$0xff]
    %v69 = vld [vmem:[%s0 + $0x18] sm:$0xff]
    %v70 = vadd.f32 %v66, %v67
    %71 = vadd.xlane.f32.xlu0 %v70
    %v72 = vpop.xlane.xlu0 %71
    %v73 = vadd.f32 %v68, %v69
    %74 = vadd.xlane.f32.xlu0 %v73
    %v75 = vpop.xlane.xlu0 %74
    %v76 = vmul.f32 %v72, 0.03125
    %v77 = vmul.f32 %v75, 0.03125
    %v78 = vmul.f32 %v66, %v66
    %v79 = vmul.f32 %v67, %v67
    %v80 = vmul.f32 %v68, %v68
    %v81 = vmul.f32 %v69, %v69
    %v82 = vadd.f32 %v78, %v79
    %83 = vadd.xlane.f32.xlu0 %v82
    %v84 = vpop.xlane.xlu0 %83
    %v85 = vadd.f32 %v80, %v81
    %86 = vadd.xlane.f32.xlu0 %v85
    %v87 = vpop.xlane.xlu0 %86
    %v88 = vmul.f32 %v84, 0.03125
    %v89 = vmul.f32 %v87, 0.03125
    %v90 = vmul.f32 %v76, %v76
    %v91 = vmul.f32 %v77, %v77
    %v92 = vsub.f32 %v88, %v90
    %v93 = vsub.f32 %v89, %v91
    %v94 = vmax.f32 %v92, 0.0
    %v95 = vmax.f32 %v93, 0.0
    %v96 = vsub.f32 %v66, %v76
    %v97 = vsub.f32 %v67, %v76
    %v98 = vsub.f32 %v68, %v77
    %v99 = vsub.f32 %v69, %v77
    %v100 = vadd.f32 %v94, 1e-05
    %v101 = vadd.f32 %v95, 1e-05
    %v102 = vrsqrt.pop %v100
    %v103 = vrsqrt.pop %v101
    %v104 = vmul.f32 %v96, %v102
    %v105 = vmul.f32 %v97, %v102
    %v106 = vmul.f32 %v98, %v103
    %v107 = vmul.f32 %v99, %v103
    %v109 = vlaneseq
    %v110 = vshrl.u32 %v109, 7
    %v111 = vsub.s32 0, %v110
    %v112 = vrot.slane %v60, %v111
    %v113 = vlaneseq
    %v114 = vshrl.u32 %v113, 7
    %v115 = vsub.s32 1, %v114
    %v116 = vrot.slane %v60, %v115
    %v119 = vmul.f32 %v104, %v112
    %v120 = vmul.f32 %v105, %v116
    %v121 = vmul.f32 %v106, %v112
    %v122 = vmul.f32 %v107, %v116
    %v124 = vlaneseq
    %v125 = vshrl.u32 %v124, 7
    %v126 = vsub.s32 0, %v125
    %v127 = vrot.slane %v61, %v126
    %v128 = vlaneseq
    %v129 = vshrl.u32 %v128, 7
    %v130 = vsub.s32 1, %v129
    %v131 = vrot.slane %v61, %v130
    %v134 = vadd.f32 %v119, %v127
    %v135 = vadd.f32 %v120, %v131
    %v136 = vadd.f32 %v121, %v127
    %v137 = vadd.f32 %v122, %v131
    %v138 = vpack.c.bf16 %v136, %v134
    %v139 = vpack.c.bf16 %v137, %v135
    %v140 = vld [vmem:[#allocation2] sm:$0xff]
    %v141 = vld [vmem:[#allocation2 + $0x8] sm:$0xff]
    %v142 = vld [vmem:[#allocation2 + $0x10] sm:$0xff]
    %v143 = vld [vmem:[#allocation2 + $0x18] sm:$0xff]
    %v144 = vld [vmem:[#allocation2 + $0x20] sm:$0xff]
    %v145 = vld [vmem:[#allocation2 + $0x28] sm:$0xff]
    %v146 = vld [vmem:[#allocation2 + $0x30] sm:$0xff]
    %v147 = vld [vmem:[#allocation2 + $0x38] sm:$0xff]
    %v148 = vld [vmem:[#allocation2 + $0x40] sm:$0xff]
    %v149 = vld [vmem:[#allocation2 + $0x48] sm:$0xff]
    %v150 = vld [vmem:[#allocation2 + $0x50] sm:$0xff]
    %v151 = vld [vmem:[#allocation2 + $0x58] sm:$0xff]
    %v152 = vld [vmem:[#allocation2 + $0x60] sm:$0xff]
    %v153 = vld [vmem:[#allocation2 + $0x68] sm:$0xff]
    %v154 = vld [vmem:[#allocation2 + $0x70] sm:$0xff]
    %v155 = vld [vmem:[#allocation2 + $0x78] sm:$0xff]
    %v156 = vld [vmem:[#allocation2 + $0x80] sm:$0xff]
    %v157 = vld [vmem:[#allocation2 + $0x88] sm:$0xff]
    %v158 = vld [vmem:[#allocation2 + $0x90] sm:$0xff]
    %v159 = vld [vmem:[#allocation2 + $0x98] sm:$0xff]
    %v160 = vld [vmem:[#allocation2 + $0xa0] sm:$0xff]
    %v161 = vld [vmem:[#allocation2 + $0xa8] sm:$0xff]
    %v162 = vld [vmem:[#allocation2 + $0xb0] sm:$0xff]
    %v163 = vld [vmem:[#allocation2 + $0xb8] sm:$0xff]
    %v164 = vld [vmem:[#allocation2 + $0xc0] sm:$0xff]
    %v165 = vld [vmem:[#allocation2 + $0xc8] sm:$0xff]
    %v166 = vld [vmem:[#allocation2 + $0xd0] sm:$0xff]
    %v167 = vld [vmem:[#allocation2 + $0xd8] sm:$0xff]
    %v168 = vld [vmem:[#allocation2 + $0xe0] sm:$0xff]
    %v169 = vld [vmem:[#allocation2 + $0xe8] sm:$0xff]
    %v170 = vld [vmem:[#allocation2 + $0xf0] sm:$0xff]
    %v171 = vld [vmem:[#allocation2 + $0xf8] sm:$0xff]
    %v172 = vld [vmem:[#allocation2 + $0x100] sm:$0xff]
    %v173 = vld [vmem:[#allocation2 + $0x108] sm:$0xff]
    %v174 = vld [vmem:[#allocation2 + $0x110] sm:$0xff]
    %v175 = vld [vmem:[#allocation2 + $0x118] sm:$0xff]
    %v176 = vld [vmem:[#allocation2 + $0x120] sm:$0xff]
    %v177 = vld [vmem:[#allocation2 + $0x128] sm:$0xff]
    %v178 = vld [vmem:[#allocation2 + $0x130] sm:$0xff]
    %v179 = vld [vmem:[#allocation2 + $0x138] sm:$0xff]
    %v180 = vld [vmem:[#allocation2 + $0x140] sm:$0xff]
    %v181 = vld [vmem:[#allocation2 + $0x148] sm:$0xff]
    %v182 = vld [vmem:[#allocation2 + $0x150] sm:$0xff]
    %v183 = vld [vmem:[#allocation2 + $0x158] sm:$0xff]
    %v184 = vld [vmem:[#allocation2 + $0x160] sm:$0xff]
    %v185 = vld [vmem:[#allocation2 + $0x168] sm:$0xff]
    %v186 = vld [vmem:[#allocation2 + $0x170] sm:$0xff]
    %v187 = vld [vmem:[#allocation2 + $0x178] sm:$0xff]
    %v188 = vld [vmem:[#allocation2 + $0x180] sm:$0xff]
    %v189 = vld [vmem:[#allocation2 + $0x188] sm:$0xff]
    %v190 = vld [vmem:[#allocation2 + $0x190] sm:$0xff]
    %v191 = vld [vmem:[#allocation2 + $0x198] sm:$0xff]
    %v192 = vld [vmem:[#allocation2 + $0x1a0] sm:$0xff]
    %v193 = vld [vmem:[#allocation2 + $0x1a8] sm:$0xff]
    %v194 = vld [vmem:[#allocation2 + $0x1b0] sm:$0xff]
    %v195 = vld [vmem:[#allocation2 + $0x1b8] sm:$0xff]
    %v196 = vld [vmem:[#allocation2 + $0x1c0] sm:$0xff]
    %v197 = vld [vmem:[#allocation2 + $0x1c8] sm:$0xff]
    %v198 = vld [vmem:[#allocation2 + $0x1d0] sm:$0xff]
    %v199 = vld [vmem:[#allocation2 + $0x1d8] sm:$0xff]
    %v200 = vld [vmem:[#allocation2 + $0x1e0] sm:$0xff]
    %v201 = vld [vmem:[#allocation2 + $0x1e8] sm:$0xff]
    %v202 = vld [vmem:[#allocation2 + $0x1f0] sm:$0xff]
    %v203 = vld [vmem:[#allocation2 + $0x1f8] sm:$0xff]
    %v205 = vlaneseq
    %v206 = vshrl.u32 %v205, 7
    %v207 = vsub.s32 0, %v206
    %v208 = vrot.slane %v64, %v207
    %v209 = vlaneseq
    %v210 = vshrl.u32 %v209, 7
    %v211 = vsub.s32 1, %v210
    %v212 = vrot.slane %v64, %v211
    %v213 = vlaneseq
    %v214 = vshrl.u32 %v213, 7
    %v215 = vsub.s32 2, %v214
    %v216 = vrot.slane %v64, %v215
    %v217 = vlaneseq
    %v218 = vshrl.u32 %v217, 7
    %v219 = vsub.s32 3, %v218
    %v220 = vrot.slane %v64, %v219
    %v289 = vunpack.c.l.b16 %v140
    %v290 = vunpack.c.h.b16 %v140
    %v291 = vunpack.c.l.b16 %v141
    %v292 = vunpack.c.h.b16 %v141
    %v293 = vunpack.c.l.b16 %v142
    %v294 = vunpack.c.h.b16 %v142
    %v295 = vunpack.c.l.b16 %v143
    %v296 = vunpack.c.h.b16 %v143
    %v297 = vunpack.c.l.b16 %v144
    %v298 = vunpack.c.h.b16 %v144
    %v299 = vunpack.c.l.b16 %v145
    %v300 = vunpack.c.h.b16 %v145
    %v301 = vunpack.c.l.b16 %v146
    %v302 = vunpack.c.h.b16 %v146
    %v303 = vunpack.c.l.b16 %v147
    %v304 = vunpack.c.h.b16 %v147
    %v305 = vunpack.c.l.b16 %v148
    %v306 = vunpack.c.h.b16 %v148
    %v307 = vunpack.c.l.b16 %v149
    %v308 = vunpack.c.h.b16 %v149
    %v309 = vunpack.c.l.b16 %v150
    %v310 = vunpack.c.h.b16 %v150
    %v311 = vunpack.c.l.b16 %v151
    %v312 = vunpack.c.h.b16 %v151
    %v313 = vunpack.c.l.b16 %v152
    %v314 = vunpack.c.h.b16 %v152
    %v315 = vunpack.c.l.b16 %v153
    %v316 = vunpack.c.h.b16 %v153
    %v317 = vunpack.c.l.b16 %v154
    %v318 = vunpack.c.h.b16 %v154
    %v319 = vunpack.c.l.b16 %v155
    %v320 = vunpack.c.h.b16 %v155
    %v321 = vunpack.c.l.b16 %v156
    %v322 = vunpack.c.h.b16 %v156
    %v323 = vunpack.c.l.b16 %v157
    %v324 = vunpack.c.h.b16 %v157
    %v325 = vunpack.c.l.b16 %v158
    %v326 = vunpack.c.h.b16 %v158
    %v327 = vunpack.c.l.b16 %v159
    %v328 = vunpack.c.h.b16 %v159
    %v329 = vunpack.c.l.b16 %v160
    %v330 = vunpack.c.h.b16 %v160
    %v331 = vunpack.c.l.b16 %v161
    %v332 = vunpack.c.h.b16 %v161
    %v333 = vunpack.c.l.b16 %v162
    %v334 = vunpack.c.h.b16 %v162
    %v335 = vunpack.c.l.b16 %v163
    %v336 = vunpack.c.h.b16 %v163
    %v337 = vunpack.c.l.b16 %v164
    %v338 = vunpack.c.h.b16 %v164
    %v339 = vunpack.c.l.b16 %v165
    %v340 = vunpack.c.h.b16 %v165
    %v341 = vunpack.c.l.b16 %v166
    %v342 = vunpack.c.h.b16 %v166
    %v343 = vunpack.c.l.b16 %v167
    %v344 = vunpack.c.h.b16 %v167
    %v345 = vunpack.c.l.b16 %v168
    %v346 = vunpack.c.h.b16 %v168
    %v347 = vunpack.c.l.b16 %v169
    %v348 = vunpack.c.h.b16 %v169
    %v349 = vunpack.c.l.b16 %v170
    %v350 = vunpack.c.h.b16 %v170
    %v351 = vunpack.c.l.b16 %v171
    %v352 = vunpack.c.h.b16 %v171
    %v353 = vunpack.c.l.b16 %v172
    %v354 = vunpack.c.h.b16 %v172
    %v355 = vunpack.c.l.b16 %v173
    %v356 = vunpack.c.h.b16 %v173
    %v357 = vunpack.c.l.b16 %v174
    %v358 = vunpack.c.h.b16 %v174
    %v359 = vunpack.c.l.b16 %v175
    %v360 = vunpack.c.h.b16 %v175
    %v361 = vunpack.c.l.b16 %v176
    %v362 = vunpack.c.h.b16 %v176
    %v363 = vunpack.c.l.b16 %v177
    %v364 = vunpack.c.h.b16 %v177
    %v365 = vunpack.c.l.b16 %v178
    %v366 = vunpack.c.h.b16 %v178
    %v367 = vunpack.c.l.b16 %v179
    %v368 = vunpack.c.h.b16 %v179
    %v369 = vunpack.c.l.b16 %v180
    %v370 = vunpack.c.h.b16 %v180
    %v371 = vunpack.c.l.b16 %v181
    %v372 = vunpack.c.h.b16 %v181
    %v373 = vunpack.c.l.b16 %v182
    %v374 = vunpack.c.h.b16 %v182
    %v375 = vunpack.c.l.b16 %v183
    %v376 = vunpack.c.h.b16 %v183
    %v377 = vunpack.c.l.b16 %v184
    %v378 = vunpack.c.h.b16 %v184
    %v379 = vunpack.c.l.b16 %v185
    %v380 = vunpack.c.h.b16 %v185
    %v381 = vunpack.c.l.b16 %v186
    %v382 = vunpack.c.h.b16 %v186
    %v383 = vunpack.c.l.b16 %v187
    %v384 = vunpack.c.h.b16 %v187
    %v385 = vunpack.c.l.b16 %v188
    %v386 = vunpack.c.h.b16 %v188
    %v387 = vunpack.c.l.b16 %v189
    %v388 = vunpack.c.h.b16 %v189
    %v389 = vunpack.c.l.b16 %v190
    %v390 = vunpack.c.h.b16 %v190
    %v391 = vunpack.c.l.b16 %v191
    %v392 = vunpack.c.h.b16 %v191
    %v393 = vunpack.c.l.b16 %v192
    %v394 = vunpack.c.h.b16 %v192
    %v395 = vunpack.c.l.b16 %v193
    %v396 = vunpack.c.h.b16 %v193
    %v397 = vunpack.c.l.b16 %v194
    %v398 = vunpack.c.h.b16 %v194
    %v399 = vunpack.c.l.b16 %v195
    %v400 = vunpack.c.h.b16 %v195
    %v401 = vunpack.c.l.b16 %v196
    %v402 = vunpack.c.h.b16 %v196
    %v403 = vunpack.c.l.b16 %v197
    %v404 = vunpack.c.h.b16 %v197
    %v405 = vunpack.c.l.b16 %v198
    %v406 = vunpack.c.h.b16 %v198
    %v407 = vunpack.c.l.b16 %v199
    %v408 = vunpack.c.h.b16 %v199
    %v409 = vunpack.c.l.b16 %v200
    %v410 = vunpack.c.h.b16 %v200
    %v411 = vunpack.c.l.b16 %v201
    %v412 = vunpack.c.h.b16 %v201
    %v413 = vunpack.c.l.b16 %v202
    %v414 = vunpack.c.h.b16 %v202
    %v415 = vunpack.c.l.b16 %v203
    %v416 = vunpack.c.h.b16 %v203
    %v417 = vpack.c.b16 %v293, %v289
    %v418 = vpack.c.b16 %v294, %v290
    %v419 = vpack.c.b16 %v295, %v291
    %v420 = vpack.c.b16 %v296, %v292
    %v421 = vpack.c.b16 %v301, %v297
    %v422 = vpack.c.b16 %v302, %v298
    %v423 = vpack.c.b16 %v303, %v299
    %v424 = vpack.c.b16 %v304, %v300
    %v425 = vpack.c.b16 %v309, %v305
    %v426 = vpack.c.b16 %v310, %v306
    %v427 = vpack.c.b16 %v311, %v307
    %v428 = vpack.c.b16 %v312, %v308
    %v429 = vpack.c.b16 %v317, %v313
    %v430 = vpack.c.b16 %v318, %v314
    %v431 = vpack.c.b16 %v319, %v315
    %v432 = vpack.c.b16 %v320, %v316
    %v433 = vpack.c.b16 %v325, %v321
    %v434 = vpack.c.b16 %v326, %v322
    %v435 = vpack.c.b16 %v327, %v323
    %v436 = vpack.c.b16 %v328, %v324
    %v437 = vpack.c.b16 %v333, %v329
    %v438 = vpack.c.b16 %v334, %v330
    %v439 = vpack.c.b16 %v335, %v331
    %v440 = vpack.c.b16 %v336, %v332
    %v441 = vpack.c.b16 %v341, %v337
    %v442 = vpack.c.b16 %v342, %v338
    %v443 = vpack.c.b16 %v343, %v339
    %v444 = vpack.c.b16 %v344, %v340
    %v445 = vpack.c.b16 %v349, %v345
    %v446 = vpack.c.b16 %v350, %v346
    %v447 = vpack.c.b16 %v351, %v347
    %v448 = vpack.c.b16 %v352, %v348
    %v449 = vpack.c.b16 %v357, %v353
    %v450 = vpack.c.b16 %v358, %v354
    %v451 = vpack.c.b16 %v359, %v355
    %v452 = vpack.c.b16 %v360, %v356
    %v453 = vpack.c.b16 %v365, %v361
    %v454 = vpack.c.b16 %v366, %v362
    %v455 = vpack.c.b16 %v367, %v363
    %v456 = vpack.c.b16 %v368, %v364
    %v457 = vpack.c.b16 %v373, %v369
    %v458 = vpack.c.b16 %v374, %v370
    %v459 = vpack.c.b16 %v375, %v371
    %v460 = vpack.c.b16 %v376, %v372
    %v461 = vpack.c.b16 %v381, %v377
    %v462 = vpack.c.b16 %v382, %v378
    %v463 = vpack.c.b16 %v383, %v379
    %v464 = vpack.c.b16 %v384, %v380
    %v465 = vpack.c.b16 %v389, %v385
    %v466 = vpack.c.b16 %v390, %v386
    %v467 = vpack.c.b16 %v391, %v387
    %v468 = vpack.c.b16 %v392, %v388
    %v469 = vpack.c.b16 %v397, %v393
    %v470 = vpack.c.b16 %v398, %v394
    %v471 = vpack.c.b16 %v399, %v395
    %v472 = vpack.c.b16 %v400, %v396
    %v473 = vpack.c.b16 %v405, %v401
    %v474 = vpack.c.b16 %v406, %v402
    %v475 = vpack.c.b16 %v407, %v403
    %v476 = vpack.c.b16 %v408, %v404
    %v477 = vpack.c.b16 %v413, %v409
    %v478 = vpack.c.b16 %v414, %v410
    %v479 = vpack.c.b16 %v415, %v411
    %v480 = vpack.c.b16 %v416, %v412
    %545 = vmatprep.subr.bf16.mxu0 %v418
    %546 = vmatpush1.bf16.msra.mxu0 %v417
    %547 = vmatprep.subr.bf16.mxu0 %v422
    %548 = vmatpush1.bf16.msra.mxu0 %v421
    %549 = vmatprep.subr.bf16.mxu0 %v426
    %550 = vmatpush1.bf16.msra.mxu0 %v425
    %551 = vmatprep.subr.bf16.mxu0 %v430
    %552 = vmatpush1.bf16.msra.mxu0 %v429
    %553 = vmatprep.subr.bf16.mxu0 %v434
    %554 = vmatpush1.bf16.msra.mxu0 %v433
    %555 = vmatprep.subr.bf16.mxu0 %v438
    %556 = vmatpush1.bf16.msra.mxu0 %v437
    %557 = vmatprep.subr.bf16.mxu0 %v442
    %558 = vmatpush1.bf16.msra.mxu0 %v441
    %559 = vmatprep.subr.bf16.mxu0 %v446
    %560 = vmatpush1.bf16.msra.mxu0 %v445
    %561 = vmatprep.subr.bf16.mxu0 %v450
    %562 = vmatpush1.bf16.msra.mxu0 %v449
    %563 = vmatprep.subr.bf16.mxu0 %v454
    %564 = vmatpush1.bf16.msra.mxu0 %v453
    %565 = vmatprep.subr.bf16.mxu0 %v458
    %566 = vmatpush1.bf16.msra.mxu0 %v457
    %567 = vmatprep.subr.bf16.mxu0 %v462
    %568 = vmatpush1.bf16.msra.mxu0 %v461
    %569 = vmatprep.subr.bf16.mxu0 %v466
    %570 = vmatpush1.bf16.msra.mxu0 %v465
    %571 = vmatprep.subr.bf16.mxu0 %v470
    %572 = vmatpush1.bf16.msra.mxu0 %v469
    %573 = vmatprep.subr.bf16.mxu0 %v474
    %574 = vmatpush1.bf16.msra.mxu0 %v473
    %575 = vmatprep.subr.bf16.mxu0 %v478
    %576 = vmatpush1.bf16.msra.mxu0 %v477
    %577 = vmatprep.mubr.bf16.mxu0 %v139
    %578 = vmatmul.mubr.bf16.gmra.mrb[0].mxu0 %v138
    %v579 = vpop.f32.mrb[0].mxu0
    %v580 = vadd.f32 %v208, %v579
    %v581 = vpop.f32.mrb[0].mxu0
    %v582 = vadd.f32 %v212, %v581
    %v583 = vpop.f32.mrb[0].mxu0
    %v584 = vadd.f32 %v208, %v583
    %v585 = vpop.f32.mrb[0].mxu0
    %v586 = vadd.f32 %v212, %v585
    %587 = vdwg.mxu0
    %588 = vmatprep.subr.bf16.mxu0 %v420
    %589 = vmatpush1.bf16.msra.mxu0 %v419
    %590 = vmatprep.subr.bf16.mxu0 %v424
    %591 = vmatpush1.bf16.msra.mxu0 %v423
    %592 = vmatprep.subr.bf16.mxu0 %v428
    %593 = vmatpush1.bf16.msra.mxu0 %v427
    %594 = vmatprep.subr.bf16.mxu0 %v432
    %595 = vmatpush1.bf16.msra.mxu0 %v431
    %596 = vmatprep.subr.bf16.mxu0 %v436
    %597 = vmatpush1.bf16.msra.mxu0 %v435
    %598 = vmatprep.subr.bf16.mxu0 %v440
    %599 = vmatpush1.bf16.msra.mxu0 %v439
    %600 = vmatprep.subr.bf16.mxu0 %v444
    %601 = vmatpush1.bf16.msra.mxu0 %v443
    %602 = vmatprep.subr.bf16.mxu0 %v448
    %603 = vmatpush1.bf16.msra.mxu0 %v447
    %604 = vmatprep.subr.bf16.mxu0 %v452
    %605 = vmatpush1.bf16.msra.mxu0 %v451
    %606 = vmatprep.subr.bf16.mxu0 %v456
    %607 = vmatpush1.bf16.msra.mxu0 %v455
    %608 = vmatprep.subr.bf16.mxu0 %v460
    %609 = vmatpush1.bf16.msra.mxu0 %v459
    %610 = vmatprep.subr.bf16.mxu0 %v464
    %611 = vmatpush1.bf16.msra.mxu0 %v463
    %612 = vmatprep.subr.bf16.mxu0 %v468
    %613 = vmatpush1.bf16.msra.mxu0 %v467
    %614 = vmatprep.subr.bf16.mxu0 %v472
    %615 = vmatpush1.bf16.msra.mxu0 %v471
    %616 = vmatprep.subr.bf16.mxu0 %v476
    %617 = vmatpush1.bf16.msra.mxu0 %v475
    %618 = vmatprep.subr.bf16.mxu0 %v480
    %619 = vmatpush1.bf16.msra.mxu0 %v479
    %620 = vmatprep.mubr.bf16.mxu0 %v139
    %621 = vmatmul.mubr.bf16.gmra.mrb[0].mxu0 %v138
    %v622 = vpop.f32.mrb[0].mxu0
    %v623 = vadd.f32 %v216, %v622
    %v624 = vpop.f32.mrb[0].mxu0
    %v625 = vadd.f32 %v220, %v624
    %v626 = vpop.f32.mrb[0].mxu0
    %v627 = vadd.f32 %v216, %v626
    %v628 = vpop.f32.mrb[0].mxu0
    %v629 = vadd.f32 %v220, %v628
    %630 = vdwg.mxu0
    %v631 = vmul.f32 %v580, 0.5
    %v632 = vmul.f32 %v582, 0.5
    %v633 = vmul.f32 %v584, 0.5
    %v634 = vmul.f32 %v586, 0.5
    %v635 = vmul.f32 %v580, 0.70710677
    %v636 = vmul.f32 %v582, 0.70710677
    %v637 = vmul.f32 %v584, 0.70710677
    %v638 = vmul.f32 %v586, 0.70710677
    %v639 = verf.f32.pop %v635
    %v640 = verf.f32.pop %v636
    %v641 = verf.f32.pop %v637
    %v642 = verf.f32.pop %v638
    %v643 = vadd.f32 %v639, 1.0
    %v644 = vadd.f32 %v640, 1.0
    %v645 = vadd.f32 %v641, 1.0
    %v646 = vadd.f32 %v642, 1.0
    %v647 = vmul.f32 %v631, %v643
    %v648 = vmul.f32 %v632, %v644
    %v649 = vmul.f32 %v633, %v645
    %v650 = vmul.f32 %v634, %v646
    %v651 = vadd.f32 %v647, %v648
    %652 = vadd.xlane.f32.xlu0 %v651
    %v653 = vpop.xlane.xlu0 %652
    %v654 = vadd.f32 %v649, %v650
    %655 = vadd.xlane.f32.xlu0 %v654
    %v656 = vpop.xlane.xlu0 %655
    %v657 = vmul.f32 %v653, 0.015625
    %v658 = vmul.f32 %v656, 0.015625
    %v659 = vmul.f32 %v647, %v647
    %v660 = vmul.f32 %v648, %v648
    %v661 = vmul.f32 %v649, %v649
    %v662 = vmul.f32 %v650, %v650
    %v663 = vadd.f32 %v659, %v660
    %664 = vadd.xlane.f32.xlu0 %v663
    %v665 = vpop.xlane.xlu0 %664
    %v666 = vadd.f32 %v661, %v662
    %667 = vadd.xlane.f32.xlu0 %v666
    %v668 = vpop.xlane.xlu0 %667
    %v669 = vmul.f32 %v665, 0.015625
    %v670 = vmul.f32 %v668, 0.015625
    %v671 = vmul.f32 %v657, %v657
    %v672 = vmul.f32 %v658, %v658
    %v673 = vsub.f32 %v669, %v671
    %v674 = vsub.f32 %v670, %v672
    %v675 = vmax.f32 %v673, 0.0
    %v676 = vmax.f32 %v674, 0.0
    %v677 = vsub.f32 %v647, %v657
    %v678 = vsub.f32 %v648, %v657
    %v679 = vsub.f32 %v649, %v658
    %v680 = vsub.f32 %v650, %v658
    %v681 = vadd.f32 %v675, 1e-05
    %v682 = vadd.f32 %v676, 1e-05
    %v683 = vrsqrt.pop %v681
    %v684 = vrsqrt.pop %v682
    %v685 = vmul.f32 %v677, %v683
    %v686 = vmul.f32 %v678, %v683
    %v687 = vmul.f32 %v679, %v684
    %v688 = vmul.f32 %v680, %v684
    %v690 = vlaneseq
    %v691 = vshrl.u32 %v690, 7
    %v692 = vsub.s32 0, %v691
    %v693 = vrot.slane %v62, %v692
    %v694 = vlaneseq
    %v695 = vshrl.u32 %v694, 7
    %v696 = vsub.s32 1, %v695
    %v697 = vrot.slane %v62, %v696
    %v700 = vmul.f32 %v685, %v693
    %v701 = vmul.f32 %v686, %v697
    %v702 = vmul.f32 %v687, %v693
    %v703 = vmul.f32 %v688, %v697
    %v705 = vlaneseq
    %v706 = vshrl.u32 %v705, 7
    %v707 = vsub.s32 0, %v706
    %v708 = vrot.slane %v63, %v707
    %v709 = vlaneseq
    %v710 = vshrl.u32 %v709, 7
    %v711 = vsub.s32 1, %v710
    %v712 = vrot.slane %v63, %v711
    %v715 = vadd.f32 %v700, %v708
    %v716 = vadd.f32 %v701, %v712
    %v717 = vadd.f32 %v702, %v708
    %v718 = vadd.f32 %v703, %v712
    %v719 = vadd.f32 %v623, %v625
    %720 = vadd.xlane.f32.xlu0 %v719
    %v721 = vpop.xlane.xlu0 %720
    %v722 = vadd.f32 %v627, %v629
    %723 = vadd.xlane.f32.xlu0 %v722
    %v724 = vpop.xlane.xlu0 %723
    %v725 = vmul.f32 %v721, 0.015625
    %v726 = vmul.f32 %v724, 0.015625
    %v727 = vmul.f32 %v623, %v623
    %v728 = vmul.f32 %v625, %v625
    %v729 = vmul.f32 %v627, %v627
    %v730 = vmul.f32 %v629, %v629
    %v731 = vadd.f32 %v727, %v728
    %732 = vadd.xlane.f32.xlu0 %v731
    %v733 = vpop.xlane.xlu0 %732
    %v734 = vadd.f32 %v729, %v730
    %735 = vadd.xlane.f32.xlu0 %v734
    %v736 = vpop.xlane.xlu0 %735
    %v737 = vmul.f32 %v733, 0.015625
    %v738 = vmul.f32 %v736, 0.015625
    %v739 = vmul.f32 %v725, %v725
    %v740 = vmul.f32 %v726, %v726
    %v741 = vsub.f32 %v737, %v739
    %v742 = vsub.f32 %v738, %v740
    %v743 = vmax.f32 %v741, 0.0
    %v744 = vmax.f32 %v742, 0.0
    %v745 = vsub.f32 %v623, %v725
    %v746 = vsub.f32 %v625, %v725
    %v747 = vsub.f32 %v627, %v726
    %v748 = vsub.f32 %v629, %v726
    %v749 = vadd.f32 %v743, 1e-05
    %v750 = vadd.f32 %v744, 1e-05
    %v751 = vrsqrt.pop %v749
    %v752 = vrsqrt.pop %v750
    %v753 = vmul.f32 %v745, %v751
    %v754 = vmul.f32 %v746, %v751
    %v755 = vmul.f32 %v747, %v752
    %v756 = vmul.f32 %v748, %v752
    %v757 = vmul.f32 %v753, %v693
    %v758 = vmul.f32 %v754, %v697
    %v759 = vmul.f32 %v755, %v693
    %v760 = vmul.f32 %v756, %v697
    %v761 = vadd.f32 %v757, %v708
    %v762 = vadd.f32 %v758, %v712
    %v763 = vadd.f32 %v759, %v708
    %v764 = vadd.f32 %v760, %v712
    %v765 = vmul.f32 %v715, %v761
    %v766 = vmul.f32 %v716, %v762
    %v767 = vmul.f32 %v717, %v763
    %v768 = vmul.f32 %v718, %v764
    %v769 = vpack.c.bf16 %v767, %v765
    %v770 = vpack.c.bf16 %v768, %v766
    %v771 = vld [vmem:[#allocation4] sm:$0xff]
    %v772 = vld [vmem:[#allocation4 + $0x8] sm:$0xff]
    %v773 = vld [vmem:[#allocation4 + $0x10] sm:$0xff]
    %v774 = vld [vmem:[#allocation4 + $0x18] sm:$0xff]
    %v775 = vld [vmem:[#allocation4 + $0x20] sm:$0xff]
    %v776 = vld [vmem:[#allocation4 + $0x28] sm:$0xff]
    %v777 = vld [vmem:[#allocation4 + $0x30] sm:$0xff]
    %v778 = vld [vmem:[#allocation4 + $0x38] sm:$0xff]
    %v779 = vld [vmem:[#allocation4 + $0x40] sm:$0xff]
    %v780 = vld [vmem:[#allocation4 + $0x48] sm:$0xff]
    %v781 = vld [vmem:[#allocation4 + $0x50] sm:$0xff]
    %v782 = vld [vmem:[#allocation4 + $0x58] sm:$0xff]
    %v783 = vld [vmem:[#allocation4 + $0x60] sm:$0xff]
    %v784 = vld [vmem:[#allocation4 + $0x68] sm:$0xff]
    %v785 = vld [vmem:[#allocation4 + $0x70] sm:$0xff]
    %v786 = vld [vmem:[#allocation4 + $0x78] sm:$0xff]
    %v787 = vld [vmem:[#allocation4 + $0x80] sm:$0xff]
    %v788 = vld [vmem:[#allocation4 + $0x88] sm:$0xff]
    %v789 = vld [vmem:[#allocation4 + $0x90] sm:$0xff]
    %v790 = vld [vmem:[#allocation4 + $0x98] sm:$0xff]
    %v791 = vld [vmem:[#allocation4 + $0xa0] sm:$0xff]
    %v792 = vld [vmem:[#allocation4 + $0xa8] sm:$0xff]
    %v793 = vld [vmem:[#allocation4 + $0xb0] sm:$0xff]
    %v794 = vld [vmem:[#allocation4 + $0xb8] sm:$0xff]
    %v795 = vld [vmem:[#allocation4 + $0xc0] sm:$0xff]
    %v796 = vld [vmem:[#allocation4 + $0xc8] sm:$0xff]
    %v797 = vld [vmem:[#allocation4 + $0xd0] sm:$0xff]
    %v798 = vld [vmem:[#allocation4 + $0xd8] sm:$0xff]
    %v799 = vld [vmem:[#allocation4 + $0xe0] sm:$0xff]
    %v800 = vld [vmem:[#allocation4 + $0xe8] sm:$0xff]
    %v801 = vld [vmem:[#allocation4 + $0xf0] sm:$0xff]
    %v802 = vld [vmem:[#allocation4 + $0xf8] sm:$0xff]
    %v804 = vlaneseq
    %v805 = vshrl.u32 %v804, 7
    %v806 = vsub.s32 0, %v805
    %v807 = vrot.slane %v65, %v806
    %v808 = vlaneseq
    %v809 = vshrl.u32 %v808, 7
    %v810 = vsub.s32 1, %v809
    %v811 = vrot.slane %v65, %v810
    %v846 = vunpack.c.l.b16 %v771
    %v847 = vunpack.c.h.b16 %v771
    %v848 = vunpack.c.l.b16 %v772
    %v849 = vunpack.c.h.b16 %v772
    %v850 = vunpack.c.l.b16 %v773
    %v851 = vunpack.c.h.b16 %v773
    %v852 = vunpack.c.l.b16 %v774
    %v853 = vunpack.c.h.b16 %v774
    %v854 = vunpack.c.l.b16 %v775
    %v855 = vunpack.c.h.b16 %v775
    %v856 = vunpack.c.l.b16 %v776
    %v857 = vunpack.c.h.b16 %v776
    %v858 = vunpack.c.l.b16 %v777
    %v859 = vunpack.c.h.b16 %v777
    %v860 = vunpack.c.l.b16 %v778
    %v861 = vunpack.c.h.b16 %v778
    %v862 = vunpack.c.l.b16 %v779
    %v863 = vunpack.c.h.b16 %v779
    %v864 = vunpack.c.l.b16 %v780
    %v865 = vunpack.c.h.b16 %v780
    %v866 = vunpack.c.l.b16 %v781
    %v867 = vunpack.c.h.b16 %v781
    %v868 = vunpack.c.l.b16 %v782
    %v869 = vunpack.c.h.b16 %v782
    %v870 = vunpack.c.l.b16 %v783
    %v871 = vunpack.c.h.b16 %v783
    %v872 = vunpack.c.l.b16 %v784
    %v873 = vunpack.c.h.b16 %v784
    %v874 = vunpack.c.l.b16 %v785
    %v875 = vunpack.c.h.b16 %v785
    %v876 = vunpack.c.l.b16 %v786
    %v877 = vunpack.c.h.b16 %v786
    %v878 = vunpack.c.l.b16 %v787
    %v879 = vunpack.c.h.b16 %v787
    %v880 = vunpack.c.l.b16 %v788
    %v881 = vunpack.c.h.b16 %v788
    %v882 = vunpack.c.l.b16 %v789
    %v883 = vunpack.c.h.b16 %v789
    %v884 = vunpack.c.l.b16 %v790
    %v885 = vunpack.c.h.b16 %v790
    %v886 = vunpack.c.l.b16 %v791
    %v887 = vunpack.c.h.b16 %v791
    %v888 = vunpack.c.l.b16 %v792
    %v889 = vunpack.c.h.b16 %v792
    %v890 = vunpack.c.l.b16 %v793
    %v891 = vunpack.c.h.b16 %v793
    %v892 = vunpack.c.l.b16 %v794
    %v893 = vunpack.c.h.b16 %v794
    %v894 = vunpack.c.l.b16 %v795
    %v895 = vunpack.c.h.b16 %v795
    %v896 = vunpack.c.l.b16 %v796
    %v897 = vunpack.c.h.b16 %v796
    %v898 = vunpack.c.l.b16 %v797
    %v899 = vunpack.c.h.b16 %v797
    %v900 = vunpack.c.l.b16 %v798
    %v901 = vunpack.c.h.b16 %v798
    %v902 = vunpack.c.l.b16 %v799
    %v903 = vunpack.c.h.b16 %v799
    %v904 = vunpack.c.l.b16 %v800
    %v905 = vunpack.c.h.b16 %v800
    %v906 = vunpack.c.l.b16 %v801
    %v907 = vunpack.c.h.b16 %v801
    %v908 = vunpack.c.l.b16 %v802
    %v909 = vunpack.c.h.b16 %v802
    %v910 = vpack.c.b16 %v848, %v846
    %v911 = vpack.c.b16 %v849, %v847
    %v912 = vpack.c.b16 %v852, %v850
    %v913 = vpack.c.b16 %v853, %v851
    %v914 = vpack.c.b16 %v856, %v854
    %v915 = vpack.c.b16 %v857, %v855
    %v916 = vpack.c.b16 %v860, %v858
    %v917 = vpack.c.b16 %v861, %v859
    %v918 = vpack.c.b16 %v864, %v862
    %v919 = vpack.c.b16 %v865, %v863
    %v920 = vpack.c.b16 %v868, %v866
    %v921 = vpack.c.b16 %v869, %v867
    %v922 = vpack.c.b16 %v872, %v870
    %v923 = vpack.c.b16 %v873, %v871
    %v924 = vpack.c.b16 %v876, %v874
    %v925 = vpack.c.b16 %v877, %v875
    %v926 = vpack.c.b16 %v880, %v878
    %v927 = vpack.c.b16 %v881, %v879
    %v928 = vpack.c.b16 %v884, %v882
    %v929 = vpack.c.b16 %v885, %v883
    %v930 = vpack.c.b16 %v888, %v886
    %v931 = vpack.c.b16 %v889, %v887
    %v932 = vpack.c.b16 %v892, %v890
    %v933 = vpack.c.b16 %v893, %v891
    %v934 = vpack.c.b16 %v896, %v894
    %v935 = vpack.c.b16 %v897, %v895
    %v936 = vpack.c.b16 %v900, %v898
    %v937 = vpack.c.b16 %v901, %v899
    %v938 = vpack.c.b16 %v904, %v902
    %v939 = vpack.c.b16 %v905, %v903
    %v940 = vpack.c.b16 %v908, %v906
    %v941 = vpack.c.b16 %v909, %v907
    %974 = vmatprep.subr.bf16.mxu0 %v911
    %975 = vmatpush1.bf16.msra.mxu0 %v910
    %976 = vmatprep.subr.bf16.mxu0 %v913
    %977 = vmatpush1.bf16.msra.mxu0 %v912
    %978 = vmatprep.subr.bf16.mxu0 %v915
    %979 = vmatpush1.bf16.msra.mxu0 %v914
    %980 = vmatprep.subr.bf16.mxu0 %v917
    %981 = vmatpush1.bf16.msra.mxu0 %v916
    %982 = vmatprep.subr.bf16.mxu0 %v919
    %983 = vmatpush1.bf16.msra.mxu0 %v918
    %984 = vmatprep.subr.bf16.mxu0 %v921
    %985 = vmatpush1.bf16.msra.mxu0 %v920
    %986 = vmatprep.subr.bf16.mxu0 %v923
    %987 = vmatpush1.bf16.msra.mxu0 %v922
    %988 = vmatprep.subr.bf16.mxu0 %v925
    %989 = vmatpush1.bf16.msra.mxu0 %v924
    %990 = vmatprep.subr.bf16.mxu0 %v927
    %991 = vmatpush1.bf16.msra.mxu0 %v926
    %992 = vmatprep.subr.bf16.mxu0 %v929
    %993 = vmatpush1.bf16.msra.mxu0 %v928
    %994 = vmatprep.subr.bf16.mxu0 %v931
    %995 = vmatpush1.bf16.msra.mxu0 %v930
    %996 = vmatprep.subr.bf16.mxu0 %v933
    %997 = vmatpush1.bf16.msra.mxu0 %v932
    %998 = vmatprep.subr.bf16.mxu0 %v935
    %999 = vmatpush1.bf16.msra.mxu0 %v934
    %1000 = vmatprep.subr.bf16.mxu0 %v937
    %1001 = vmatpush1.bf16.msra.mxu0 %v936
    %1002 = vmatprep.subr.bf16.mxu0 %v939
    %1003 = vmatpush1.bf16.msra.mxu0 %v938
    %1004 = vmatprep.subr.bf16.mxu0 %v941
    %1005 = vmatpush1.bf16.msra.mxu0 %v940
    %1006 = vmatprep.mubr.bf16.mxu0 %v770
    %1007 = vmatmul.mubr.bf16.gmra.mrb[0].mxu0 %v769
    %v1008 = vpop.f32.mrb[0].mxu0
    %v1009 = vadd.f32 %v807, %v1008
    %v1010 = vpop.f32.mrb[0].mxu0
    %v1011 = vadd.f32 %v811, %v1010
    %v1012 = vpop.f32.mrb[0].mxu0
    %v1013 = vadd.f32 %v807, %v1012
    %v1014 = vpop.f32.mrb[0].mxu0
    %v1015 = vadd.f32 %v811, %v1014
    %1016 = vdwg.mxu0
    %v1017 = vadd.f32 %v1009, %v66
    %v1018 = vadd.f32 %v1011, %v67
    %v1019 = vadd.f32 %v1013, %v68
    %v1020 = vadd.f32 %v1015, %v69
    %1021 = vst [vmem:[%s9] sm:$0xff] %v1017
    %1022 = vst [vmem:[%s9 + $0x8] sm:$0xff] %v1018
    %1023 = vst [vmem:[%s9 + $0x10] sm:$0xff] %v1019
    %1024 = vst [vmem:[%s9 + $0x18] sm:$0xff] %v1020
    // Predicated region
    $region46: #{activator_block.1} parent=1 // pred_check
      _
    $region47: #{activator_block.1} parent=1 // pred_check_branch
      %1026 = sbr.rel (0) target = $region49
    $region48: #{activator_block.1} parent=1 // pred_region
      _
    $region49: #{activator_block.1} parent=1 // pred_fallthru
      _
    // Predicated region
    $region50: #{activator_block.1} parent=1 // pred_check
      _
    $region51: #{activator_block.1} parent=1 // pred_check_branch
      %1028 = sbr.rel (0) target = $region53
    $region52: #{activator_block.1} parent=1 // pred_region
      _
    $region53: #{activator_block.1} parent=1 // pred_fallthru
      _
    %1029 = vsyncpa [#allocation3], 1
    %1030 = vsyncpa [#allocation5], 1

// kernel: activator_block.1
$region0: #{activator_block.1}
  #allocation0 [shape = 'u32[]', space=smem, size = 0x4, offset = 0x4, fixed_abs, tag = 'smem constant byte address 0x4 - core index']
  #allocation1 [shape = 'u32[144,128]{1,0:T(1,128)}', space=vmem, size = 0x12000, scoped, tag = 'internal scratch']
  %s0 = inlined_call_operand.vmem [shape: f32[16,256], index: 0, kind: input, shape index: {}, may-alias: {0,9}]
  %s1 = inlined_call_operand.vmem [shape: f32[1,256], index: 1, kind: input, shape index: {}]
  %s2 = inlined_call_operand.vmem [shape: f32[1,256], index: 2, kind: input, shape index: {}]
  %s3 = inlined_call_operand.hbm [shape: bf16[256,512], index: 3, kind: input, shape index: {}]
  %s4 = inlined_call_operand.vmem [shape: f32[1,512], index: 4, kind: input, shape index: {}]
  %s5 = inlined_call_operand.hbm [shape: bf16[256,256], index: 5, kind: input, shape index: {}]
  %s6 = inlined_call_operand.vmem [shape: f32[1,256], index: 6, kind: input, shape index: {}]
  %s7 = inlined_call_operand.vmem [shape: f32[1,256], index: 7, kind: input, shape index: {}]
  %s8 = inlined_call_operand.vmem [shape: f32[1,256], index: 8, kind: input, shape index: {}]
  %s9 = inlined_call_operand.vmem [shape: f32[16,256], index: 9, kind: output, shape index: {}, may-alias: {0,9}]
  %s10 = sld [smem:[#allocation0]]
  $region54: #{activator_block.1} parent=0
    _
  %s12 = ssub.s32 1, %s10
  %s13 = scalar_select 0, %s12, %s10
  $region1: #{activator_block.1} parent=0
    #allocation2 [shape = 'u8[262144]{0}', space=vmem, size = 0x40000, scoped, tag = 'input window, operand 3, single buffered']
    #allocation3 [shape = 's32[1]{0}', space=sflag, size = 0x4, scoped, tag = 'scoped memory for activator_block.1']
    #allocation4 [shape = 'u8[131072]{0}', space=vmem, size = 0x20000, scoped, tag = 'input window, operand 5, single buffered']
    #allocation5 [shape = 's32[1]{0}', space=sflag, size = 0x4, scoped, tag = 'scoped memory for activator_block.1']
    %14 = vsyncpa [#allocation3], 0
    %15 = vsyncpa [#allocation5], 0
    // Predicated region
    $region2: #{activator_block.1} parent=1 // pred_check
      _
    $region3: #{activator_block.1} parent=1 // pred_check_branch
      %17 = sbr.rel (0) target = $region5
    $region4: #{activator_block.1} parent=1 // pred_region
      _
    $region5: #{activator_block.1} parent=1 // pred_fallthru
      _
    // Predicated region
    $region6: #{activator_block.1} parent=1 // pred_check
      _
    $region7: #{activator_block.1} parent=1 // pred_check_branch
      %19 = sbr.rel (0) target = $region9
    $region8: #{activator_block.1} parent=1 // pred_region
      _
    $region9: #{activator_block.1} parent=1 // pred_fallthru
      _
    // Predicated region
    $region10: #{activator_block.1} parent=1 // pred_check
      _
    $region11: #{activator_block.1} parent=1 // pred_check_branch
      %21 = sbr.rel (0) target = $region13
    $region12: #{activator_block.1} parent=1 // pred_region
      _
    $region13: #{activator_block.1} parent=1 // pred_fallthru
      _
    // Predicated region
    $region14: #{activator_block.1} parent=1 // pred_check
      _
    $region15: #{activator_block.1} parent=1 // pred_check_branch
      %23 = sbr.rel (0) target = $region17
    $region16: #{activator_block.1} parent=1 // pred_region
      %s25 = ssub.s32 8192, 8192
      %26 = vsyncadd [#allocation3], %s25
      %s27 = sshll.u32 [#allocation2], 4
      %s28 = int_to_ptr.vmem [resolvable:$true] %s27
      %33 = dma.hbm_to_vmem [thread:$0]  %s3, 8192, %s28, [#allocation3], 256, 256, 16
    $region17: #{activator_block.1} parent=1 // pred_fallthru
      _
    // Predicated region
    $region18: #{activator_block.1} parent=1 // pred_check
      _
    $region19: #{activator_block.1} parent=1 // pred_check_branch
      %35 = sbr.rel (0) target = $region21
    $region20: #{activator_block.1} parent=1 // pred_region
      _
    $region21: #{activator_block.1} parent=1 // pred_fallthru
      _
    // Predicated region
    $region22: #{activator_block.1} parent=1 // pred_check
      _
    $region23: #{activator_block.1} parent=1 // pred_check_branch
      %37 = sbr.rel (0) target = $region25
    $region24: #{activator_block.1} parent=1 // pred_region
      %s39 = ssub.s32 4096, 4096
      %40 = vsyncadd [#allocation5], %s39
      %s41 = sshll.u32 [#allocation4], 4
      %s42 = int_to_ptr.vmem [resolvable:$true] %s41
      %47 = dma.hbm_to_vmem [thread:$0]  %s5, 4096, %s42, [#allocation5], 128, 128, 8
    $region25: #{activator_block.1} parent=1 // pred_fallthru
      _
    // Predicated region
    $region26: #{activator_block.1} parent=1 // pred_check
      _
    $region27: #{activator_block.1} parent=1 // pred_check_branch
      %49 = sbr.rel (0) target = $region29
    $region28: #{activator_block.1} parent=1 // pred_region
      _
    $region29: #{activator_block.1} parent=1 // pred_fallthru
      _
    // Predicated region
    $region30: #{activator_block.1} parent=1 // pred_check
      _
    $region31: #{activator_block.1} parent=1 // pred_check_branch
      %51 = sbr.rel (0) target = $region33
    $region32: #{activator_block.1} parent=1 // pred_region
      _
    $region33: #{activator_block.1} parent=1 // pred_fallthru
      _
    // Predicated region
    $region34: #{activator_block.1} parent=1 // pred_check
      _
    $region35: #{activator_block.1} parent=1 // pred_check_branch
      %53 = sbr.rel (0) target = $region37
    $region36: #{activator_block.1} parent=1 // pred_region
      _
    $region37: #{activator_block.1} parent=1 // pred_fallthru
      _
    // Predicated region
    $region38: #{activator_block.1} parent=1 // pred_check
      _
    $region39: #{activator_block.1} parent=1 // pred_check_branch
      %55 = sbr.rel (0) target = $region41
    $region40: #{activator_block.1} parent=1 // pred_region
      %56 = dma.done [#allocation3], 8192
    $region41: #{activator_block.1} parent=1 // pred_fallthru
      _
    // Predicated region
    $region42: #{activator_block.1} parent=1 // pred_check
      _
    $region43: #{activator_block.1} parent=1 // pred_check_branch
      %58 = sbr.rel (0) target = $region45
    $region44: #{activator_block.1} parent=1 // pred_region
      %59 = dma.done [#allocation5], 4096
    $region45: #{activator_block.1} parent=1 // pred_fallthru
      _
    %v60 = vld [vmem:[%s1] sm:$0x3]
    %v61 = vld [vmem:[%s2] sm:$0x3]
    %v62 = vld [vmem:[%s7] sm:$0x3]
    %v63 = vld [vmem:[%s8] sm:$0x3]
    %v64 = vld [vmem:[%s4] sm:$0xf]
    %v65 = vld [vmem:[%s6] sm:$0x3]
    %v66 = vld [vmem:[%s0] sm:$0xff]
    %v67 = vld [vmem:[%s0 + $0x8] sm:$0xff]
    %v68 = vld [vmem:[%s0 + $0x10] sm:$0xff]
    %v69 = vld [vmem:[%s0 + $0x18] sm:$0xff]
    %v70 = vadd.f32 %v66, %v67
    %71 = vadd.xlane.f32.xlu0 %v70
    %v72 = vpop.xlane.xlu0 %71
    %v73 = vadd.f32 %v68, %v69
    %74 = vadd.xlane.f32.xlu0 %v73
    %v75 = vpop.xlane.xlu0 %74
    %v76 = vmul.f32 %v72, 0.03125
    %v77 = vmul.f32 %v75, 0.03125
    %v78 = vmul.f32 %v66, %v66
    %v79 = vmul.f32 %v67, %v67
    %v80 = vmul.f32 %v68, %v68
    %v81 = vmul.f32 %v69, %v69
    %v82 = vadd.f32 %v78, %v79
    %83 = vadd.xlane.f32.xlu0 %v82
    %v84 = vpop.xlane.xlu0 %83
    %v85 = vadd.f32 %v80, %v81
    %86 = vadd.xlane.f32.xlu0 %v85
    %v87 = vpop.xlane.xlu0 %86
    %v88 = vmul.f32 %v84, 0.03125
    %v89 = vmul.f32 %v87, 0.03125
    %v90 = vmul.f32 %v76, %v76
    %v91 = vmul.f32 %v77, %v77
    %v92 = vsub.f32 %v88, %v90
    %v93 = vsub.f32 %v89, %v91
    %v94 = vmax.f32 %v92, 0.0
    %v95 = vmax.f32 %v93, 0.0
    %v96 = vsub.f32 %v66, %v76
    %v97 = vsub.f32 %v67, %v76
    %v98 = vsub.f32 %v68, %v77
    %v99 = vsub.f32 %v69, %v77
    %v100 = vadd.f32 %v94, 1e-05
    %v101 = vadd.f32 %v95, 1e-05
    %v102 = vrsqrt.pop %v100
    %v103 = vrsqrt.pop %v101
    %v104 = vmul.f32 %v96, %v102
    %v105 = vmul.f32 %v97, %v102
    %v106 = vmul.f32 %v98, %v103
    %v107 = vmul.f32 %v99, %v103
    %v109 = vlaneseq
    %v110 = vshrl.u32 %v109, 7
    %v111 = vsub.s32 0, %v110
    %v112 = vrot.slane %v60, %v111
    %v113 = vlaneseq
    %v114 = vshrl.u32 %v113, 7
    %v115 = vsub.s32 1, %v114
    %v116 = vrot.slane %v60, %v115
    %v119 = vmul.f32 %v104, %v112
    %v120 = vmul.f32 %v105, %v116
    %v121 = vmul.f32 %v106, %v112
    %v122 = vmul.f32 %v107, %v116
    %v124 = vlaneseq
    %v125 = vshrl.u32 %v124, 7
    %v126 = vsub.s32 0, %v125
    %v127 = vrot.slane %v61, %v126
    %v128 = vlaneseq
    %v129 = vshrl.u32 %v128, 7
    %v130 = vsub.s32 1, %v129
    %v131 = vrot.slane %v61, %v130
    %v134 = vadd.f32 %v119, %v127
    %v135 = vadd.f32 %v120, %v131
    %v136 = vadd.f32 %v121, %v127
    %v137 = vadd.f32 %v122, %v131
    %v138 = vpack.c.bf16 %v136, %v134
    %v139 = vpack.c.bf16 %v137, %v135
    %v140 = vld [vmem:[#allocation2] sm:$0xff]
    %v141 = vld [vmem:[#allocation2 + $0x8] sm:$0xff]
    %v142 = vld [vmem:[#allocation2 + $0x10] sm:$0xff]
    %v143 = vld [vmem:[#allocation2 + $0x18] sm:$0xff]
    %v144 = vld [vmem:[#allocation2 + $0x20] sm:$0xff]
    %v145 = vld [vmem:[#allocation2 + $0x28] sm:$0xff]
    %v146 = vld [vmem:[#allocation2 + $0x30] sm:$0xff]
    %v147 = vld [vmem:[#allocation2 + $0x38] sm:$0xff]
    %v148 = vld [vmem:[#allocation2 + $0x40] sm:$0xff]
    %v149 = vld [vmem:[#allocation2 + $0x48] sm:$0xff]
    %v150 = vld [vmem:[#allocation2 + $0x50] sm:$0xff]
    %v151 = vld [vmem:[#allocation2 + $0x58] sm:$0xff]
    %v152 = vld [vmem:[#allocation2 + $0x60] sm:$0xff]
    %v153 = vld [vmem:[#allocation2 + $0x68] sm:$0xff]
    %v154 = vld [vmem:[#allocation2 + $0x70] sm:$0xff]
    %v155 = vld [vmem:[#allocation2 + $0x78] sm:$0xff]
    %v156 = vld [vmem:[#allocation2 + $0x80] sm:$0xff]
    %v157 = vld [vmem:[#allocation2 + $0x88] sm:$0xff]
    %v158 = vld [vmem:[#allocation2 + $0x90] sm:$0xff]
    %v159 = vld [vmem:[#allocation2 + $0x98] sm:$0xff]
    %v160 = vld [vmem:[#allocation2 + $0xa0] sm:$0xff]
    %v161 = vld [vmem:[#allocation2 + $0xa8] sm:$0xff]
    %v162 = vld [vmem:[#allocation2 + $0xb0] sm:$0xff]
    %v163 = vld [vmem:[#allocation2 + $0xb8] sm:$0xff]
    %v164 = vld [vmem:[#allocation2 + $0xc0] sm:$0xff]
    %v165 = vld [vmem:[#allocation2 + $0xc8] sm:$0xff]
    %v166 = vld [vmem:[#allocation2 + $0xd0] sm:$0xff]
    %v167 = vld [vmem:[#allocation2 + $0xd8] sm:$0xff]
    %v168 = vld [vmem:[#allocation2 + $0xe0] sm:$0xff]
    %v169 = vld [vmem:[#allocation2 + $0xe8] sm:$0xff]
    %v170 = vld [vmem:[#allocation2 + $0xf0] sm:$0xff]
    %v171 = vld [vmem:[#allocation2 + $0xf8] sm:$0xff]
    %v172 = vld [vmem:[#allocation2 + $0x100] sm:$0xff]
    %v173 = vld [vmem:[#allocation2 + $0x108] sm:$0xff]
    %v174 = vld [vmem:[#allocation2 + $0x110] sm:$0xff]
    %v175 = vld [vmem:[#allocation2 + $0x118] sm:$0xff]
    %v176 = vld [vmem:[#allocation2 + $0x120] sm:$0xff]
    %v177 = vld [vmem:[#allocation2 + $0x128] sm:$0xff]
    %v178 = vld [vmem:[#allocation2 + $0x130] sm:$0xff]
    %v179 = vld [vmem:[#allocation2 + $0x138] sm:$0xff]
    %v180 = vld [vmem:[#allocation2 + $0x140] sm:$0xff]
    %v181 = vld [vmem:[#allocation2 + $0x148] sm:$0xff]
    %v182 = vld [vmem:[#allocation2 + $0x150] sm:$0xff]
    %v183 = vld [vmem:[#allocation2 + $0x158] sm:$0xff]
    %v184 = vld [vmem:[#allocation2 + $0x160] sm:$0xff]
    %v185 = vld [vmem:[#allocation2 + $0x168] sm:$0xff]
    %v186 = vld [vmem:[#allocation2 + $0x170] sm:$0xff]
    %v187 = vld [vmem:[#allocation2 + $0x178] sm:$0xff]
    %v188 = vld [vmem:[#allocation2 + $0x180] sm:$0xff]
    %v189 = vld [vmem:[#allocation2 + $0x188] sm:$0xff]
    %v190 = vld [vmem:[#allocation2 + $0x190] sm:$0xff]
    %v191 = vld [vmem:[#allocation2 + $0x198] sm:$0xff]
    %v192 = vld [vmem:[#allocation2 + $0x1a0] sm:$0xff]
    %v193 = vld [vmem:[#allocation2 + $0x1a8] sm:$0xff]
    %v194 = vld [vmem:[#allocation2 + $0x1b0] sm:$0xff]
    %v195 = vld [vmem:[#allocation2 + $0x1b8] sm:$0xff]
    %v196 = vld [vmem:[#allocation2 + $0x1c0] sm:$0xff]
    %v197 = vld [vmem:[#allocation2 + $0x1c8] sm:$0xff]
    %v198 = vld [vmem:[#allocation2 + $0x1d0] sm:$0xff]
    %v199 = vld [vmem:[#allocation2 + $0x1d8] sm:$0xff]
    %v200 = vld [vmem:[#allocation2 + $0x1e0] sm:$0xff]
    %v201 = vld [vmem:[#allocation2 + $0x1e8] sm:$0xff]
    %v202 = vld [vmem:[#allocation2 + $0x1f0] sm:$0xff]
    %v203 = vld [vmem:[#allocation2 + $0x1f8] sm:$0xff]
    %v205 = vlaneseq
    %v206 = vshrl.u32 %v205, 7
    %v207 = vsub.s32 0, %v206
    %v208 = vrot.slane %v64, %v207
    %v209 = vlaneseq
    %v210 = vshrl.u32 %v209, 7
    %v211 = vsub.s32 1, %v210
    %v212 = vrot.slane %v64, %v211
    %v213 = vlaneseq
    %v214 = vshrl.u32 %v213, 7
    %v215 = vsub.s32 2, %v214
    %v216 = vrot.slane %v64, %v215
    %v217 = vlaneseq
    %v218 = vshrl.u32 %v217, 7
    %v219 = vsub.s32 3, %v218
    %v220 = vrot.slane %v64, %v219
    %v289 = vunpack.c.l.b16 %v140
    %v290 = vunpack.c.h.b16 %v140
    %v291 = vunpack.c.l.b16 %v141
    %v292 = vunpack.c.h.b16 %v141
    %v293 = vunpack.c.l.b16 %v142
    %v294 = vunpack.c.h.b16 %v142
    %v295 = vunpack.c.l.b16 %v143
    %v296 = vunpack.c.h.b16 %v143
    %v297 = vunpack.c.l.b16 %v144
    %v298 = vunpack.c.h.b16 %v144
    %v299 = vunpack.c.l.b16 %v145
    %v300 = vunpack.c.h.b16 %v145
    %v301 = vunpack.c.l.b16 %v146
    %v302 = vunpack.c.h.b16 %v146
    %v303 = vunpack.c.l.b16 %v147
    %v304 = vunpack.c.h.b16 %v147
    %v305 = vunpack.c.l.b16 %v148
    %v306 = vunpack.c.h.b16 %v148
    %v307 = vunpack.c.l.b16 %v149
    %v308 = vunpack.c.h.b16 %v149
    %v309 = vunpack.c.l.b16 %v150
    %v310 = vunpack.c.h.b16 %v150
    %v311 = vunpack.c.l.b16 %v151
    %v312 = vunpack.c.h.b16 %v151
    %v313 = vunpack.c.l.b16 %v152
    %v314 = vunpack.c.h.b16 %v152
    %v315 = vunpack.c.l.b16 %v153
    %v316 = vunpack.c.h.b16 %v153
    %v317 = vunpack.c.l.b16 %v154
    %v318 = vunpack.c.h.b16 %v154
    %v319 = vunpack.c.l.b16 %v155
    %v320 = vunpack.c.h.b16 %v155
    %v321 = vunpack.c.l.b16 %v156
    %v322 = vunpack.c.h.b16 %v156
    %v323 = vunpack.c.l.b16 %v157
    %v324 = vunpack.c.h.b16 %v157
    %v325 = vunpack.c.l.b16 %v158
    %v326 = vunpack.c.h.b16 %v158
    %v327 = vunpack.c.l.b16 %v159
    %v328 = vunpack.c.h.b16 %v159
    %v329 = vunpack.c.l.b16 %v160
    %v330 = vunpack.c.h.b16 %v160
    %v331 = vunpack.c.l.b16 %v161
    %v332 = vunpack.c.h.b16 %v161
    %v333 = vunpack.c.l.b16 %v162
    %v334 = vunpack.c.h.b16 %v162
    %v335 = vunpack.c.l.b16 %v163
    %v336 = vunpack.c.h.b16 %v163
    %v337 = vunpack.c.l.b16 %v164
    %v338 = vunpack.c.h.b16 %v164
    %v339 = vunpack.c.l.b16 %v165
    %v340 = vunpack.c.h.b16 %v165
    %v341 = vunpack.c.l.b16 %v166
    %v342 = vunpack.c.h.b16 %v166
    %v343 = vunpack.c.l.b16 %v167
    %v344 = vunpack.c.h.b16 %v167
    %v345 = vunpack.c.l.b16 %v168
    %v346 = vunpack.c.h.b16 %v168
    %v347 = vunpack.c.l.b16 %v169
    %v348 = vunpack.c.h.b16 %v169
    %v349 = vunpack.c.l.b16 %v170
    %v350 = vunpack.c.h.b16 %v170
    %v351 = vunpack.c.l.b16 %v171
    %v352 = vunpack.c.h.b16 %v171
    %v353 = vunpack.c.l.b16 %v172
    %v354 = vunpack.c.h.b16 %v172
    %v355 = vunpack.c.l.b16 %v173
    %v356 = vunpack.c.h.b16 %v173
    %v357 = vunpack.c.l.b16 %v174
    %v358 = vunpack.c.h.b16 %v174
    %v359 = vunpack.c.l.b16 %v175
    %v360 = vunpack.c.h.b16 %v175
    %v361 = vunpack.c.l.b16 %v176
    %v362 = vunpack.c.h.b16 %v176
    %v363 = vunpack.c.l.b16 %v177
    %v364 = vunpack.c.h.b16 %v177
    %v365 = vunpack.c.l.b16 %v178
    %v366 = vunpack.c.h.b16 %v178
    %v367 = vunpack.c.l.b16 %v179
    %v368 = vunpack.c.h.b16 %v179
    %v369 = vunpack.c.l.b16 %v180
    %v370 = vunpack.c.h.b16 %v180
    %v371 = vunpack.c.l.b16 %v181
    %v372 = vunpack.c.h.b16 %v181
    %v373 = vunpack.c.l.b16 %v182
    %v374 = vunpack.c.h.b16 %v182
    %v375 = vunpack.c.l.b16 %v183
    %v376 = vunpack.c.h.b16 %v183
    %v377 = vunpack.c.l.b16 %v184
    %v378 = vunpack.c.h.b16 %v184
    %v379 = vunpack.c.l.b16 %v185
    %v380 = vunpack.c.h.b16 %v185
    %v381 = vunpack.c.l.b16 %v186
    %v382 = vunpack.c.h.b16 %v186
    %v383 = vunpack.c.l.b16 %v187
    %v384 = vunpack.c.h.b16 %v187
    %v385 = vunpack.c.l.b16 %v188
    %v386 = vunpack.c.h.b16 %v188
    %v387 = vunpack.c.l.b16 %v189
    %v388 = vunpack.c.h.b16 %v189
    %v389 = vunpack.c.l.b16 %v190
    %v390 = vunpack.c.h.b16 %v190
    %v391 = vunpack.c.l.b16 %v191
    %v392 = vunpack.c.h.b16 %v191
    %v393 = vunpack.c.l.b16 %v192
    %v394 = vunpack.c.h.b16 %v192
    %v395 = vunpack.c.l.b16 %v193
    %v396 = vunpack.c.h.b16 %v193
    %v397 = vunpack.c.l.b16 %v194
    %v398 = vunpack.c.h.b16 %v194
    %v399 = vunpack.c.l.b16 %v195
    %v400 = vunpack.c.h.b16 %v195
    %v401 = vunpack.c.l.b16 %v196
    %v402 = vunpack.c.h.b16 %v196
    %v403 = vunpack.c.l.b16 %v197
    %v404 = vunpack.c.h.b16 %v197
    %v405 = vunpack.c.l.b16 %v198
    %v406 = vunpack.c.h.b16 %v198
    %v407 = vunpack.c.l.b16 %v199
    %v408 = vunpack.c.h.b16 %v199
    %v409 = vunpack.c.l.b16 %v200
    %v410 = vunpack.c.h.b16 %v200
    %v411 = vunpack.c.l.b16 %v201
    %v412 = vunpack.c.h.b16 %v201
    %v413 = vunpack.c.l.b16 %v202
    %v414 = vunpack.c.h.b16 %v202
    %v415 = vunpack.c.l.b16 %v203
    %v416 = vunpack.c.h.b16 %v203
    %v417 = vpack.c.b16 %v293, %v289
    %v418 = vpack.c.b16 %v294, %v290
    %v419 = vpack.c.b16 %v295, %v291
    %v420 = vpack.c.b16 %v296, %v292
    %v421 = vpack.c.b16 %v301, %v297
    %v422 = vpack.c.b16 %v302, %v298
    %v423 = vpack.c.b16 %v303, %v299
    %v424 = vpack.c.b16 %v304, %v300
    %v425 = vpack.c.b16 %v309, %v305
    %v426 = vpack.c.b16 %v310, %v306
    %v427 = vpack.c.b16 %v311, %v307
    %v428 = vpack.c.b16 %v312, %v308
    %v429 = vpack.c.b16 %v317, %v313
    %v430 = vpack.c.b16 %v318, %v314
    %v431 = vpack.c.b16 %v319, %v315
    %v432 = vpack.c.b16 %v320, %v316
    %v433 = vpack.c.b16 %v325, %v321
    %v434 = vpack.c.b16 %v326, %v322
    %v435 = vpack.c.b16 %v327, %v323
    %v436 = vpack.c.b16 %v328, %v324
    %v437 = vpack.c.b16 %v333, %v329
    %v438 = vpack.c.b16 %v334, %v330
    %v439 = vpack.c.b16 %v335, %v331
    %v440 = vpack.c.b16 %v336, %v332
    %v441 = vpack.c.b16 %v341, %v337
    %v442 = vpack.c.b16 %v342, %v338
    %v443 = vpack.c.b16 %v343, %v339
    %v444 = vpack.c.b16 %v344, %v340
    %v445 = vpack.c.b16 %v349, %v345
    %v446 = vpack.c.b16 %v350, %v346
    %v447 = vpack.c.b16 %v351, %v347
    %v448 = vpack.c.b16 %v352, %v348
    %v449 = vpack.c.b16 %v357, %v353
    %v450 = vpack.c.b16 %v358, %v354
    %v451 = vpack.c.b16 %v359, %v355
    %v452 = vpack.c.b16 %v360, %v356
    %v453 = vpack.c.b16 %v365, %v361
    %v454 = vpack.c.b16 %v366, %v362
    %v455 = vpack.c.b16 %v367, %v363
    %v456 = vpack.c.b16 %v368, %v364
    %v457 = vpack.c.b16 %v373, %v369
    %v458 = vpack.c.b16 %v374, %v370
    %v459 = vpack.c.b16 %v375, %v371
    %v460 = vpack.c.b16 %v376, %v372
    %v461 = vpack.c.b16 %v381, %v377
    %v462 = vpack.c.b16 %v382, %v378
    %v463 = vpack.c.b16 %v383, %v379
    %v464 = vpack.c.b16 %v384, %v380
    %v465 = vpack.c.b16 %v389, %v385
    %v466 = vpack.c.b16 %v390, %v386
    %v467 = vpack.c.b16 %v391, %v387
    %v468 = vpack.c.b16 %v392, %v388
    %v469 = vpack.c.b16 %v397, %v393
    %v470 = vpack.c.b16 %v398, %v394
    %v471 = vpack.c.b16 %v399, %v395
    %v472 = vpack.c.b16 %v400, %v396
    %v473 = vpack.c.b16 %v405, %v401
    %v474 = vpack.c.b16 %v406, %v402
    %v475 = vpack.c.b16 %v407, %v403
    %v476 = vpack.c.b16 %v408, %v404
    %v477 = vpack.c.b16 %v413, %v409
    %v478 = vpack.c.b16 %v414, %v410
    %v479 = vpack.c.b16 %v415, %v411
    %v480 = vpack.c.b16 %v416, %v412
    %545 = vmatprep.subr.bf16.mxu0 %v418
    %546 = vmatpush1.bf16.msra.mxu0 %v417
    %547 = vmatprep.subr.bf16.mxu0 %v422
    %548 = vmatpush1.bf16.msra.mxu0 %v421
    %549 = vmatprep.subr.bf16.mxu0 %v426
    %550 = vmatpush1.bf16.msra.mxu0 %v425
    %551 = vmatprep.subr.bf16.mxu0 %v430
    %552 = vmatpush1.bf16.msra.mxu0 %v429
    %553 = vmatprep.subr.bf16.mxu0 %v434
    %554 = vmatpush1.bf16.msra.mxu0 %v433
    %555 = vmatprep.subr.bf16.mxu0 %v438
    %556 = vmatpush1.bf16.msra.mxu0 %v437
    %557 = vmatprep.subr.bf16.mxu0 %v442
    %558 = vmatpush1.bf16.msra.mxu0 %v441
    %559 = vmatprep.subr.bf16.mxu0 %v446
    %560 = vmatpush1.bf16.msra.mxu0 %v445
    %561 = vmatprep.subr.bf16.mxu0 %v450
    %562 = vmatpush1.bf16.msra.mxu0 %v449
    %563 = vmatprep.subr.bf16.mxu0 %v454
    %564 = vmatpush1.bf16.msra.mxu0 %v453
    %565 = vmatprep.subr.bf16.mxu0 %v458
    %566 = vmatpush1.bf16.msra.mxu0 %v457
    %567 = vmatprep.subr.bf16.mxu0 %v462
    %568 = vmatpush1.bf16.msra.mxu0 %v461
    %569 = vmatprep.subr.bf16.mxu0 %v466
    %570 = vmatpush1.bf16.msra.mxu0 %v465
    %571 = vmatprep.subr.bf16.mxu0 %v470
    %572 = vmatpush1.bf16.msra.mxu0 %v469
    %573 = vmatprep.subr.bf16.mxu0 %v474
    %574 = vmatpush1.bf16.msra.mxu0 %v473
    %575 = vmatprep.subr.bf16.mxu0 %v478
    %576 = vmatpush1.bf16.msra.mxu0 %v477
    %577 = vmatprep.mubr.bf16.mxu0 %v139
    %578 = vmatmul.mubr.bf16.gmra.mrb[0].mxu0 %v138
    %v579 = vpop.f32.mrb[0].mxu0
    %v580 = vadd.f32 %v208, %v579
    %v581 = vpop.f32.mrb[0].mxu0
    %v582 = vadd.f32 %v212, %v581
    %v583 = vpop.f32.mrb[0].mxu0
    %v584 = vadd.f32 %v208, %v583
    %v585 = vpop.f32.mrb[0].mxu0
    %v586 = vadd.f32 %v212, %v585
    %587 = vdwg.mxu0
    %588 = vmatprep.subr.bf16.mxu0 %v420
    %589 = vmatpush1.bf16.msra.mxu0 %v419
    %590 = vmatprep.subr.bf16.mxu0 %v424
    %591 = vmatpush1.bf16.msra.mxu0 %v423
    %592 = vmatprep.subr.bf16.mxu0 %v428
    %593 = vmatpush1.bf16.msra.mxu0 %v427
    %594 = vmatprep.subr.bf16.mxu0 %v432
    %595 = vmatpush1.bf16.msra.mxu0 %v431
    %596 = vmatprep.subr.bf16.mxu0 %v436
    %597 = vmatpush1.bf16.msra.mxu0 %v435
    %598 = vmatprep.subr.bf16.mxu0 %v440
    %599 = vmatpush1.bf16.msra.mxu0 %v439
    %600 = vmatprep.subr.bf16.mxu0 %v444
    %601 = vmatpush1.bf16.msra.mxu0 %v443
    %602 = vmatprep.subr.bf16.mxu0 %v448
    %603 = vmatpush1.bf16.msra.mxu0 %v447
    %604 = vmatprep.subr.bf16.mxu0 %v452
    %605 = vmatpush1.bf16.msra.mxu0 %v451
    %606 = vmatprep.subr.bf16.mxu0 %v456
    %607 = vmatpush1.bf16.msra.mxu0 %v455
    %608 = vmatprep.subr.bf16.mxu0 %v460
    %609 = vmatpush1.bf16.msra.mxu0 %v459
    %610 = vmatprep.subr.bf16.mxu0 %v464
    %611 = vmatpush1.bf16.msra.mxu0 %v463
    %612 = vmatprep.subr.bf16.mxu0 %v468
    %613 = vmatpush1.bf16.msra.mxu0 %v467
    %614 = vmatprep.subr.bf16.mxu0 %v472
    %615 = vmatpush1.bf16.msra.mxu0 %v471
    %616 = vmatprep.subr.bf16.mxu0 %v476
    %617 = vmatpush1.bf16.msra.mxu0 %v475
    %618 = vmatprep.subr.bf16.mxu0 %v480
    %619 = vmatpush1.bf16.msra.mxu0 %v479
    %620 = vmatprep.mubr.bf16.mxu0 %v139
    %621 = vmatmul.mubr.bf16.gmra.mrb[0].mxu0 %v138
    %v622 = vpop.f32.mrb[0].mxu0
    %v623 = vadd.f32 %v216, %v622
    %v624 = vpop.f32.mrb[0].mxu0
    %v625 = vadd.f32 %v220, %v624
    %v626 = vpop.f32.mrb[0].mxu0
    %v627 = vadd.f32 %v216, %v626
    %v628 = vpop.f32.mrb[0].mxu0
    %v629 = vadd.f32 %v220, %v628
    %630 = vdwg.mxu0
    %v631 = vmul.f32 %v580, 0.5
    %v632 = vmul.f32 %v582, 0.5
    %v633 = vmul.f32 %v584, 0.5
    %v634 = vmul.f32 %v586, 0.5
    %v635 = vmul.f32 %v580, 0.70710677
    %v636 = vmul.f32 %v582, 0.70710677
    %v637 = vmul.f32 %v584, 0.70710677
    %v638 = vmul.f32 %v586, 0.70710677
    %v639 = verf.f32.pop %v635
    %v640 = verf.f32.pop %v636
    %v641 = verf.f32.pop %v637
    %v642 = verf.f32.pop %v638
    %v643 = vadd.f32 %v639, 1.0
    %v644 = vadd.f32 %v640, 1.0
    %v645 = vadd.f32 %v641, 1.0
    %v646 = vadd.f32 %v642, 1.0
    %v647 = vmul.f32 %v631, %v643
    %v648 = vmul.f32 %v632, %v644
    %v649 = vmul.f32 %v633, %v645
    %v650 = vmul.f32 %v634, %v646
    %v651 = vadd.f32 %v647, %v648
    %652 = vadd.xlane.f32.xlu0 %v651
    %v653 = vpop.xlane.xlu0 %652
    %v654 = vadd.f32 %v649, %v650
    %655 = vadd.xlane.f32.xlu0 %v654
    %v656 = vpop.xlane.xlu0 %655
    %v657 = vmul.f32 %v653, 0.015625
    %v658 = vmul.f32 %v656, 0.015625
    %v659 = vmul.f32 %v647, %v647
    %v660 = vmul.f32 %v648, %v648
    %v661 = vmul.f32 %v649, %v649
    %v662 = vmul.f32 %v650, %v650
    %v663 = vadd.f32 %v659, %v660
    %664 = vadd.xlane.f32.xlu0 %v663
    %v665 = vpop.xlane.xlu0 %664
    %v666 = vadd.f32 %v661, %v662
    %667 = vadd.xlane.f32.xlu0 %v666
    %v668 = vpop.xlane.xlu0 %667
    %v669 = vmul.f32 %v665, 0.015625
    %v670 = vmul.f32 %v668, 0.015625
    %v671 = vmul.f32 %v657, %v657
    %v672 = vmul.f32 %v658, %v658
    %v673 = vsub.f32 %v669, %v671
    %v674 = vsub.f32 %v670, %v672
    %v675 = vmax.f32 %v673, 0.0
    %v676 = vmax.f32 %v674, 0.0
    %v677 = vsub.f32 %v647, %v657
    %v678 = vsub.f32 %v648, %v657
    %v679 = vsub.f32 %v649, %v658
    %v680 = vsub.f32 %v650, %v658
    %v681 = vadd.f32 %v675, 1e-05
    %v682 = vadd.f32 %v676, 1e-05
    %v683 = vrsqrt.pop %v681
    %v684 = vrsqrt.pop %v682
    %v685 = vmul.f32 %v677, %v683
    %v686 = vmul.f32 %v678, %v683
    %v687 = vmul.f32 %v679, %v684
    %v688 = vmul.f32 %v680, %v684
    %v690 = vlaneseq
    %v691 = vshrl.u32 %v690, 7
    %v692 = vsub.s32 0, %v691
    %v693 = vrot.slane %v62, %v692
    %v694 = vlaneseq
    %v695 = vshrl.u32 %v694, 7
    %v696 = vsub.s32 1, %v695
    %v697 = vrot.slane %v62, %v696
    %v700 = vmul.f32 %v685, %v693
    %v701 = vmul.f32 %v686, %v697
    %v702 = vmul.f32 %v687, %v693
    %v703 = vmul.f32 %v688, %v697
    %v705 = vlaneseq
    %v706 = vshrl.u32 %v705, 7
    %v707 = vsub.s32 0, %v706
    %v708 = vrot.slane %v63, %v707
    %v709 = vlaneseq
    %v710 = vshrl.u32 %v709, 7
    %v711 = vsub.s32 1, %v710
    %v712 = vrot.slane %v63, %v711
    %v715 = vadd.f32 %v700, %v708
    %v716 = vadd.f32 %v701, %v712
    %v717 = vadd.f32 %v702, %v708
    %v718 = vadd.f32 %v703, %v712
    %v719 = vadd.f32 %v623, %v625
    %720 = vadd.xlane.f32.xlu0 %v719
    %v721 = vpop.xlane.xlu0 %720
    %v722 = vadd.f32 %v627, %v629
    %723 = vadd.xlane.f32.xlu0 %v722
    %v724 = vpop.xlane.xlu0 %723
    %v725 = vmul.f32 %v721, 0.015625
    %v726 = vmul.f32 %v724, 0.015625
    %v727 = vmul.f32 %v623, %v623
    %v728 = vmul.f32 %v625, %v625
    %v729 = vmul.f32 %v627, %v627
    %v730 = vmul.f32 %v629, %v629
    %v731 = vadd.f32 %v727, %v728
    %732 = vadd.xlane.f32.xlu0 %v731
    %v733 = vpop.xlane.xlu0 %732
    %v734 = vadd.f32 %v729, %v730
    %735 = vadd.xlane.f32.xlu0 %v734
    %v736 = vpop.xlane.xlu0 %735
    %v737 = vmul.f32 %v733, 0.015625
    %v738 = vmul.f32 %v736, 0.015625
    %v739 = vmul.f32 %v725, %v725
    %v740 = vmul.f32 %v726, %v726
    %v741 = vsub.f32 %v737, %v739
    %v742 = vsub.f32 %v738, %v740
    %v743 = vmax.f32 %v741, 0.0
    %v744 = vmax.f32 %v742, 0.0
    %v745 = vsub.f32 %v623, %v725
    %v746 = vsub.f32 %v625, %v725
    %v747 = vsub.f32 %v627, %v726
    %v748 = vsub.f32 %v629, %v726
    %v749 = vadd.f32 %v743, 1e-05
    %v750 = vadd.f32 %v744, 1e-05
    %v751 = vrsqrt.pop %v749
    %v752 = vrsqrt.pop %v750
    %v753 = vmul.f32 %v745, %v751
    %v754 = vmul.f32 %v746, %v751
    %v755 = vmul.f32 %v747, %v752
    %v756 = vmul.f32 %v748, %v752
    %v757 = vmul.f32 %v753, %v693
    %v758 = vmul.f32 %v754, %v697
    %v759 = vmul.f32 %v755, %v693
    %v760 = vmul.f32 %v756, %v697
    %v761 = vadd.f32 %v757, %v708
    %v762 = vadd.f32 %v758, %v712
    %v763 = vadd.f32 %v759, %v708
    %v764 = vadd.f32 %v760, %v712
    %v765 = vmul.f32 %v715, %v761
    %v766 = vmul.f32 %v716, %v762
    %v767 = vmul.f32 %v717, %v763
    %v768 = vmul.f32 %v718, %v764
    %v769 = vpack.c.bf16 %v767, %v765
    %v770 = vpack.c.bf16 %v768, %v766
    %v771 = vld [vmem:[#allocation4] sm:$0xff]
    %v772 = vld [vmem:[#allocation4 + $0x8] sm:$0xff]
    %v773 = vld [vmem:[#allocation4 + $0x10] sm:$0xff]
    %v774 = vld [vmem:[#allocation4 + $0x18] sm:$0xff]
    %v775 = vld [vmem:[#allocation4 + $0x20] sm:$0xff]
    %v776 = vld [vmem:[#allocation4 + $0x28] sm:$0xff]
    %v777 = vld [vmem:[#allocation4 + $0x30] sm:$0xff]
    %v778 = vld [vmem:[#allocation4 + $0x38] sm:$0xff]
    %v779 = vld [vmem:[#allocation4 + $0x40] sm:$0xff]
    %v780 = vld [vmem:[#allocation4 + $0x48] sm:$0xff]
    %v781 = vld [vmem:[#allocation4 + $0x50] sm:$0xff]
    %v782 = vld [vmem:[#allocation4 + $0x58] sm:$0xff]
    %v783 = vld [vmem:[#allocation4 + $0x60] sm:$0xff]
    %v784 = vld [vmem:[#allocation4 + $0x68] sm:$0xff]
    %v785 = vld [vmem:[#allocation4 + $0x70] sm:$0xff]
    %v786 = vld [vmem:[#allocation4 + $0x78] sm:$0xff]
    %v787 = vld [vmem:[#allocation4 + $0x80] sm:$0xff]
    %v788 = vld [vmem:[#allocation4 + $0x88] sm:$0xff]
    %v789 = vld [vmem:[#allocation4 + $0x90] sm:$0xff]
    %v790 = vld [vmem:[#allocation4 + $0x98] sm:$0xff]
    %v791 = vld [vmem:[#allocation4 + $0xa0] sm:$0xff]
    %v792 = vld [vmem:[#allocation4 + $0xa8] sm:$0xff]
    %v793 = vld [vmem:[#allocation4 + $0xb0] sm:$0xff]
    %v794 = vld [vmem:[#allocation4 + $0xb8] sm:$0xff]
    %v795 = vld [vmem:[#allocation4 + $0xc0] sm:$0xff]
    %v796 = vld [vmem:[#allocation4 + $0xc8] sm:$0xff]
    %v797 = vld [vmem:[#allocation4 + $0xd0] sm:$0xff]
    %v798 = vld [vmem:[#allocation4 + $0xd8] sm:$0xff]
    %v799 = vld [vmem:[#allocation4 + $0xe0] sm:$0xff]
    %v800 = vld [vmem:[#allocation4 + $0xe8] sm:$0xff]
    %v801 = vld [vmem:[#allocation4 + $0xf0] sm:$0xff]
    %v802 = vld [vmem:[#allocation4 + $0xf8] sm:$0xff]
    %v804 = vlaneseq
    %v805 = vshrl.u32 %v804, 7
    %v806 = vsub.s32 0, %v805
    %v807 = vrot.slane %v65, %v806
    %v808 = vlaneseq
    %v809 = vshrl.u32 %v808, 7
    %v810 = vsub.s32 1, %v809
    %v811 = vrot.slane %v65, %v810
    %v846 = vunpack.c.l.b16 %v771
    %v847 = vunpack.c.h.b16 %v771
    %v848 = vunpack.c.l.b16 %v772
    %v849 = vunpack.c.h.b16 %v772
    %v850 = vunpack.c.l.b16 %v773
    %v851 = vunpack.c.h.b16 %v773
    %v852 = vunpack.c.l.b16 %v774
    %v853 = vunpack.c.h.b16 %v774
    %v854 = vunpack.c.l.b16 %v775
    %v855 = vunpack.c.h.b16 %v775
    %v856 = vunpack.c.l.b16 %v776
    %v857 = vunpack.c.h.b16 %v776
    %v858 = vunpack.c.l.b16 %v777
    %v859 = vunpack.c.h.b16 %v777
    %v860 = vunpack.c.l.b16 %v778
    %v861 = vunpack.c.h.b16 %v778
    %v862 = vunpack.c.l.b16 %v779
    %v863 = vunpack.c.h.b16 %v779
    %v864 = vunpack.c.l.b16 %v780
    %v865 = vunpack.c.h.b16 %v780
    %v866 = vunpack.c.l.b16 %v781
    %v867 = vunpack.c.h.b16 %v781
    %v868 = vunpack.c.l.b16 %v782
    %v869 = vunpack.c.h.b16 %v782
    %v870 = vunpack.c.l.b16 %v783
    %v871 = vunpack.c.h.b16 %v783
    %v872 = vunpack.c.l.b16 %v784
    %v873 = vunpack.c.h.b16 %v784
    %v874 = vunpack.c.l.b16 %v785
    %v875 = vunpack.c.h.b16 %v785
    %v876 = vunpack.c.l.b16 %v786
    %v877 = vunpack.c.h.b16 %v786
    %v878 = vunpack.c.l.b16 %v787
    %v879 = vunpack.c.h.b16 %v787
    %v880 = vunpack.c.l.b16 %v788
    %v881 = vunpack.c.h.b16 %v788
    %v882 = vunpack.c.l.b16 %v789
    %v883 = vunpack.c.h.b16 %v789
    %v884 = vunpack.c.l.b16 %v790
    %v885 = vunpack.c.h.b16 %v790
    %v886 = vunpack.c.l.b16 %v791
    %v887 = vunpack.c.h.b16 %v791
    %v888 = vunpack.c.l.b16 %v792
    %v889 = vunpack.c.h.b16 %v792
    %v890 = vunpack.c.l.b16 %v793
    %v891 = vunpack.c.h.b16 %v793
    %v892 = vunpack.c.l.b16 %v794
    %v893 = vunpack.c.h.b16 %v794
    %v894 = vunpack.c.l.b16 %v795
    %v895 = vunpack.c.h.b16 %v795
    %v896 = vunpack.c.l.b16 %v796
    %v897 = vunpack.c.h.b16 %v796
    %v898 = vunpack.c.l.b16 %v797
    %v899 = vunpack.c.h.b16 %v797
    %v900 = vunpack.c.l.b16 %v798
    %v901 = vunpack.c.h.b16 %v798
    %v902 = vunpack.c.l.b16 %v799
    %v903 = vunpack.c.h.b16 %v799
    %v904 = vunpack.c.l.b16 %v800
    %v905 = vunpack.c.h.b16 %v800
    %v906 = vunpack.c.l.b16 %v801
    %v907 = vunpack.c.h.b16 %v801
    %v908 = vunpack.c.l.b16 %v802
    %v909 = vunpack.c.h.b16 %v802
    %v910 = vpack.c.b16 %v848, %v846
    %v911 = vpack.c.b16 %v849, %v847
    %v912 = vpack.c.b16 %v852, %v850
    %v913 = vpack.c.b16 %v853, %v851
    %v914 = vpack.c.b16 %v856, %v854
    %v915 = vpack.c.b16 %v857, %v855
    %v916 = vpack.c.b16 %v860, %v858
    %v917 = vpack.c.b16 %v861, %v859
    %v918 = vpack.c.b16 %v864, %v862
    %v919 = vpack.c.b16 %v865, %v863
    %v920 = vpack.c.b16 %v868, %v866
    %v921 = vpack.c.b16 %v869, %v867
    %v922 = vpack.c.b16 %v872, %v870
    %v923 = vpack.c.b16 %v873, %v871
    %v924 = vpack.c.b16 %v876, %v874
    %v925 = vpack.c.b16 %v877, %v875
    %v926 = vpack.c.b16 %v880, %v878
    %v927 = vpack.c.b16 %v881, %v879
    %v928 = vpack.c.b16 %v884, %v882
    %v929 = vpack.c.b16 %v885, %v883
    %v930 = vpack.c.b16 %v888, %v886
    %v931 = vpack.c.b16 %v889, %v887
    %v932 = vpack.c.b16 %v892, %v890
    %v933 = vpack.c.b16 %v893, %v891
    %v934 = vpack.c.b16 %v896, %v894
    %v935 = vpack.c.b16 %v897, %v895
    %v936 = vpack.c.b16 %v900, %v898
    %v937 = vpack.c.b16 %v901, %v899
    %v938 = vpack.c.b16 %v904, %v902
    %v939 = vpack.c.b16 %v905, %v903
    %v940 = vpack.c.b16 %v908, %v906
    %v941 = vpack.c.b16 %v909, %v907
    %974 = vmatprep.subr.bf16.mxu0 %v911
    %975 = vmatpush1.bf16.msra.mxu0 %v910
    %976 = vmatprep.subr.bf16.mxu0 %v913
    %977 = vmatpush1.bf16.msra.mxu0 %v912
    %978 = vmatprep.subr.bf16.mxu0 %v915
    %979 = vmatpush1.bf16.msra.mxu0 %v914
    %980 = vmatprep.subr.bf16.mxu0 %v917
    %981 = vmatpush1.bf16.msra.mxu0 %v916
    %982 = vmatprep.subr.bf16.mxu0 %v919
    %983 = vmatpush1.bf16.msra.mxu0 %v918
    %984 = vmatprep.subr.bf16.mxu0 %v921
    %985 = vmatpush1.bf16.msra.mxu0 %v920
    %986 = vmatprep.subr.bf16.mxu0 %v923
    %987 = vmatpush1.bf16.msra.mxu0 %v922
    %988 = vmatprep.subr.bf16.mxu0 %v925
    %989 = vmatpush1.bf16.msra.mxu0 %v924
    %990 = vmatprep.subr.bf16.mxu0 %v927
    %991 = vmatpush1.bf16.msra.mxu0 %v926
    %992 = vmatprep.subr.bf16.mxu0 %v929
    %993 = vmatpush1.bf16.msra.mxu0 %v928
    %994 = vmatprep.subr.bf16.mxu0 %v931
    %995 = vmatpush1.bf16.msra.mxu0 %v930
    %996 = vmatprep.subr.bf16.mxu0 %v933
    %997 = vmatpush1.bf16.msra.mxu0 %v932
    %998 = vmatprep.subr.bf16.mxu0 %v935
    %999 = vmatpush1.bf16.msra.mxu0 %v934
    %1000 = vmatprep.subr.bf16.mxu0 %v937
    %1001 = vmatpush1.bf16.msra.mxu0 %v936
    %1002 = vmatprep.subr.bf16.mxu0 %v939
    %1003 = vmatpush1.bf16.msra.mxu0 %v938
    %1004 = vmatprep.subr.bf16.mxu0 %v941
    %1005 = vmatpush1.bf16.msra.mxu0 %v940
    %1006 = vmatprep.mubr.bf16.mxu0 %v770
    %1007 = vmatmul.mubr.bf16.gmra.mrb[0].mxu0 %v769
    %v1008 = vpop.f32.mrb[0].mxu0
    %v1009 = vadd.f32 %v807, %v1008
    %v1010 = vpop.f32.mrb[0].mxu0
    %v1011 = vadd.f32 %v811, %v1010
    %v1012 = vpop.f32.mrb[0].mxu0
    %v1013 = vadd.f32 %v807, %v1012
    %v1014 = vpop.f32.mrb[0].mxu0
    %v1015 = vadd.f32 %v811, %v1014
    %1016 = vdwg.mxu0
    %v1017 = vadd.f32 %v1009, %v66
    %v1018 = vadd.f32 %v1011, %v67
    %v1019 = vadd.f32 %v1013, %v68
    %v1020 = vadd.f32 %v1015, %v69
    %1021 = vst [vmem:[%s9] sm:$0xff] %v1017
    %1022 = vst [vmem:[%s9 + $0x8] sm:$0xff] %v1018
    %1023 = vst [vmem:[%s9 + $0x10] sm:$0xff] %v1019
    %1024 = vst [vmem:[%s9 + $0x18] sm:$0xff] %v1020
    // Predicated region
    $region46: #{activator_block.1} parent=1 // pred_check
      _
    $region47: #{activator_block.1} parent=1 // pred_check_branch
      %1026 = sbr.rel (0) target = $region49
    $region48: #{activator_block.1} parent=1 // pred_region
      _
    $region49: #{activator_block.1} parent=1 // pred_fallthru
      _
    // Predicated region
    $region50: #{activator_block.1} parent=1 // pred_check
      _
    $region51: #{activator_block.1} parent=1 // pred_check_branch
      %1028 = sbr.rel (0) target = $region53
    $region52: #{activator_block.1} parent=1 // pred_region
      _
    $region53: #{activator_block.1} parent=1 // pred_fallthru
      _
    %1029 = vsyncpa [#allocation3], 1
    %1030 = vsyncpa [#allocation5], 1

</llo_original>
